<compile_context>
chip_gen: v6e
topology: v6e:2x2x1
jax: 0.10.0
libtpu: 0.0.40
codegen_flags: <defaults>
</compile_context>

<pallas_src>
import functools

import jax
import jax.numpy as jnp
import numpy as np
from jax import lax
from jax.experimental import pallas as pl
from jax.experimental.pallas import tpu as pltpu


# ---------------------------------------------------------------------------
# In-kernel helpers
# ---------------------------------------------------------------------------
def _mish(v):
    # mish(x) = x * tanh(softplus(x)) = x * ((1+e^x)^2 - 1) / ((1+e^x)^2 + 1)
    e = jnp.exp(v)
    t2 = (1.0 + e) * (1.0 + e)
    out = v * (t2 - 1.0) * pl.reciprocal(t2 + 1.0, approx=True)
    # overflow guard: for x > 20, tanh(softplus(x)) == 1 in f32
    return jnp.where(v > 20.0, v, out)


# ---------------------------------------------------------------------------
# Fused kernel: one batch element per grid step
# ---------------------------------------------------------------------------
def _cond_res_block_kernel(
    x_ref, scale_ref, bias_ref, w1_ref, w2_ref, vecs_ref, gmat_ref,
    *rest, T, T_pad, K, eps, has_res,
):
    if has_res:
        wr_ref, out_ref = rest
    else:
        (out_ref,) = rest

    f32 = jnp.float32
    pad = K // 2
    inv_t = 1.0 / T

    x = x_ref[0]                              # (C_in, T_pad), zero for t >= T
    gmat = gmat_ref[...]                      # (C_out, C_out) group-average

    # validity mask over the (lane) time axis: 1.0 for t < T else 0.0
    col = lax.broadcasted_iota(jnp.int32, (1, T_pad), 1)
    mask = (col < T).astype(f32)              # (1, T_pad)

    b1 = vecs_ref[:, 0:1]
    g1w = vecs_ref[:, 1:2]
    g1b = vecs_ref[:, 2:3]
    b2 = vecs_ref[:, 3:4]
    g2w = vecs_ref[:, 4:5]
    g2b = vecs_ref[:, 5:6]

    def conv(h, w_ref, b):
        # K time-shifted taps stacked along the contraction (sublane) dim ->
        # one MXU matmul with a K*C-deep contraction.  Circular wrap of the
        # roll lands in the zeroed halo (T_pad >= T + pad), so taps are exact.
        parts = []
        for k in range(K):
            d = k - pad
            if d == 0:
                parts.append(h)
            else:
                parts.append(pltpu.roll(h, shift=(-d) % T_pad, axis=1))
        hs = jnp.concatenate(parts, axis=0)   # (K*C, T_pad)
        return jnp.dot(w_ref[...], hs.astype(w_ref.dtype),
                       preferred_element_type=jnp.float32) + b

    def gnorm(h, gamma, beta):
        # reduce over T first (XLU), then group-combine with a tiny matvec;
        # centered two-pass variance (avoids E[x^2]-E[x]^2 cancellation).
        hm = h * mask
        mean = jnp.dot(gmat, jnp.sum(hm, axis=1, keepdims=True),
                       preferred_element_type=jnp.float32) * inv_t
        d = h - mean
        dm = d * mask
        var = jnp.dot(gmat, jnp.sum(dm * dm, axis=1, keepdims=True),
                      preferred_element_type=jnp.float32) * inv_t
        return d * lax.rsqrt(var + eps) * gamma + beta

    # ---- Conv1dBlock #1: Conv1d(k=K) -> GroupNorm -> Mish -------------------
    h = conv(x, w1_ref, b1)
    h = _mish(gnorm(h, g1w, g1b))

    # ---- FiLM conditioning (scale/bias precomputed in the wrapper) ----------
    h = scale_ref[0] * h + bias_ref[0]

    # ---- Conv1dBlock #2 (zero the halo so rolled taps see real zero pad) ----
    h = conv(h * mask, w2_ref, b2)
    h = _mish(gnorm(h, g2w, g2b))

    # ---- Residual path -------------------------------------------------------
    if has_res:
        res = jnp.dot(wr_ref[...], x.astype(wr_ref.dtype),
                      preferred_element_type=jnp.float32) + vecs_ref[:, 6:7]
    else:
        res = x                                # identity: no matmul at all

    out_ref[0] = (h + res).astype(out_ref.dtype)   # dense full-lane store


# ---------------------------------------------------------------------------
# Wrapper
# ---------------------------------------------------------------------------
def conditional_residual_block_1d(x, cond, params, *, n_groups=8,
                                  kernel_size=3, eps=1e-5,
                                  matmul_dtype=jnp.float32):
    """Pallas equivalent of ConditionalResidualBlock1D.forward(x, cond).

    x: (B, C_in, T) float32, cond: (B, cond_dim) float32.
    params: PyTorch-layout weights (see __main__).
    Returns: (B, C_out, T) float32.

    matmul_dtype=jnp.bfloat16 feeds the MXU bf16 operands on v6e/v7x (f32
    accumulation); default f32 keeps numerics bit-comparable to the reference.
    """
    f32 = jnp.float32
    B, C_in, T = x.shape
    K = kernel_size
    assert K % 2 == 1, "kernel_size must be odd (padding = K // 2)"
    pad = K // 2

    conv1_w = jnp.asarray(params["conv1_w"], f32)          # (C_out, C_in, K)
    C_out = conv1_w.shape[0]
    assert C_out % n_groups == 0
    has_res = params.get("res_w") is not None
    if not has_res:
        assert C_in == C_out, "identity residual requires C_in == C_out"

    # ---- lane-dense time axis: pad T to a multiple of 128, leaving a halo ----
    T_pad = pl.cdiv(T + pad, 128) * 128
    x_p = jnp.pad(x.astype(f32), ((0, 0), (0, 0), (0, T_pad - T)))

    # ---- FiLM hoisted to one batched GEMM (no 1-lane matvec in-kernel) -------
    cond_f = cond.astype(f32)
    cond_m = cond_f * jnp.tanh(jax.nn.softplus(cond_f))
    embed = jnp.dot(cond_m, jnp.asarray(params["cond_w"], f32).T,
                    precision=lax.Precision.HIGHEST)
    embed = embed + jnp.asarray(params["cond_b"], f32)
    scale = embed[:, :C_out].reshape(B, C_out, 1)
    bias = embed[:, C_out:].reshape(B, C_out, 1)

    # ---- conv weights folded to a single (C_out, K*C) contraction ------------
    w1 = jnp.transpose(conv1_w, (0, 2, 1)).reshape(C_out, K * C_in)
    w1 = w1.astype(matmul_dtype)
    w2 = jnp.transpose(jnp.asarray(params["conv2_w"], f32), (0, 2, 1))
    w2 = w2.reshape(C_out, K * C_out).astype(matmul_dtype)

    # ---- small per-channel vectors packed into one (C_out, 7) slab -----------
    def _col(name):
        v = params.get(name)
        if v is None:
            return jnp.zeros((C_out,), f32)
        return jnp.asarray(v, f32).reshape(C_out)

    vecs = jnp.stack([_col("conv1_b"), _col("gn1_w"), _col("gn1_b"),
                      _col("conv2_b"), _col("gn2_w"), _col("gn2_b"),
                      _col("res_b")], axis=1)               # (C_out, 7)

    # group-average matrix (C, C): 1/cs if same group else 0 (hoisted constant)
    cs = C_out // n_groups
    ids = np.arange(C_out)
    gmat = jnp.asarray(
        (ids[:, None] // cs == ids[None, :] // cs).astype(np.float32) / cs)

    inputs = [x_p, scale, bias, w1, w2, vecs, gmat]

    def _const(arr):
        nd = arr.ndim
        return pl.BlockSpec(tuple(arr.shape), lambda b, _nd=nd: (0,) * _nd)

    in_specs = [
        pl.BlockSpec((1, C_in, T_pad), lambda b: (b, 0, 0)),
        pl.BlockSpec((1, C_out, 1), lambda b: (b, 0, 0)),
        pl.BlockSpec((1, C_out, 1), lambda b: (b, 0, 0)),
        _const(w1), _const(w2), _const(vecs), _const(gmat),
    ]
    if has_res:
        wr = jnp.asarray(params["res_w"], f32).reshape(C_out, C_in)
        wr = wr.astype(matmul_dtype)
        inputs.append(wr)
        in_specs.append(_const(wr))

    kernel = functools.partial(_cond_res_block_kernel,
                               T=T, T_pad=T_pad, K=K, eps=eps,
                               has_res=has_res)

    grid_spec = pltpu.PrefetchScalarGridSpec(
        num_scalar_prefetch=0,
        grid=(B,),
        in_specs=in_specs,
        out_specs=pl.BlockSpec((1, C_out, T_pad), lambda b: (b, 0, 0)),
    )

    out_p = pl.pallas_call(
        kernel,
        out_shape=jax.ShapeDtypeStruct((B, C_out, T_pad), f32),
        grid_spec=grid_spec,
        compiler_params=pltpu.CompilerParams(
            dimension_semantics=("parallel",)),
    )(*inputs)
    # TODO(synk): for very large C_out*T on v7x (64 MiB VMEM), add a T-tile
    # grid axis and set vmem_limit_bytes explicitly.
    return out_p[:, :, :T]


# ---------------------------------------------------------------------------
# Pure-JAX reference (mirrors the PyTorch module semantics)
# ---------------------------------------------------------------------------
def _reference_forward(x, cond, p, *, n_groups, eps=1e-5):
    hi = lax.Precision.HIGHEST

    def mish(v):
        return v * jnp.tanh(jax.nn.softplus(v))

    def conv1d(v, w, b):
        pad = w.shape[-1] // 2
        out = lax.conv_general_dilated(
            v, w, window_strides=(1,), padding=[(pad, pad)],
            dimension_numbers=("NCH", "OIH", "NCH"), precision=hi)
        return out + b[None, :, None]

    def gnorm(v, gamma, beta):
        B, C, T = v.shape
        g = v.reshape(B, n_groups, (C // n_groups) * T)
        mean = g.mean(axis=-1, keepdims=True)
        var = g.var(axis=-1, keepdims=True)
        g = (g - mean) / jnp.sqrt(var + eps)
        g = g.reshape(B, C, T)
        return g * gamma[None, :, None] + beta[None, :, None]

    C_out = p["conv1_w"].shape[0]
    h = mish(gnorm(conv1d(x, p["conv1_w"], p["conv1_b"]), p["gn1_w"], p["gn1_b"]))
    embed = jnp.dot(mish(cond), p["cond_w"].T, precision=hi) + p["cond_b"]
    scale = embed[:, :C_out][:, :, None]
    bias = embed[:, C_out:][:, :, None]
    h = scale * h + bias
    h = mish(gnorm(conv1d(h, p["conv2_w"], p["conv2_b"]), p["gn2_w"], p["gn2_b"]))
    if p.get("res_w") is not None:
        res = conv1d(x, p["res_w"], p["res_b"])
    else:
        res = x
    return h + res


if __name__ == "__main__":
    key = jax.random.PRNGKey(0)
    B, C_in, C_out, T, cond_dim = 2, 8, 16, 16, 32
    K, n_groups = 3, 8
    keys = jax.random.split(key, 16)
    s = 0.2

    x = jax.random.normal(keys[0], (B, C_in, T), jnp.float32)
    cond = jax.random.normal(keys[1], (B, cond_dim), jnp.float32)
    params = dict(
        conv1_w=s * jax.random.normal(keys[2], (C_out, C_in, K), jnp.float32),
        conv1_b=s * jax.random.normal(keys[3], (C_out,), jnp.float32),
        gn1_w=1.0 + s * jax.random.normal(keys[4], (C_out,), jnp.float32),
        gn1_b=s * jax.random.normal(keys[5], (C_out,), jnp.float32),
        conv2_w=s * jax.random.normal(keys[6], (C_out, C_out, K), jnp.float32),
        conv2_b=s * jax.random.normal(keys[7], (C_out,), jnp.float32),
        gn2_w=1.0 + s * jax.random.normal(keys[8], (C_out,), jnp.float32),
        gn2_b=s * jax.random.normal(keys[9], (C_out,), jnp.float32),
        cond_w=s * jax.random.normal(keys[10], (2 * C_out, cond_dim), jnp.float32),
        cond_b=s * jax.random.normal(keys[11], (2 * C_out,), jnp.float32),
        res_w=s * jax.random.normal(keys[12], (C_out, C_in, 1), jnp.float32),
        res_b=s * jax.random.normal(keys[13], (C_out,), jnp.float32),
    )

    out = conditional_residual_block_1d(x, cond, params,
                                        n_groups=n_groups, kernel_size=K)
    out = jax.block_until_ready(out)

    ref = _reference_forward(x, cond, params, n_groups=n_groups)
    assert out.shape == (B, C_out, T), out.shape
    err = float(jnp.max(jnp.abs(out - ref)))
    assert err < 1e-2, err
    print("KERNEL_OK")
</pallas_src>

<mosaic_0001>
module attributes {stable_mosaic.version = 11 : i64} {
  func.func @_cond_res_block_kernel(%arg0: i32, %arg1: memref<1x8x128xf32, #tpu.memory_space<vmem>>, %arg2: memref<1x16x1xf32, #tpu.memory_space<vmem>>, %arg3: memref<1x16x1xf32, #tpu.memory_space<vmem>>, %arg4: memref<16x24xf32, #tpu.memory_space<vmem>>, %arg5: memref<16x48xf32, #tpu.memory_space<vmem>>, %arg6: memref<16x7xf32, #tpu.memory_space<vmem>>, %arg7: memref<16x16xf32, #tpu.memory_space<vmem>>, %arg8: memref<16x8xf32, #tpu.memory_space<vmem>>, %arg9: memref<1x16x128xf32, #tpu.memory_space<vmem>>) attributes {dimension_semantics = [#tpu.dimension_semantics<parallel>], iteration_bounds = array<i64: 2>, scalar_prefetch = 0 : i64, scratch_operands = 0 : i64, tpu.core_type = #tpu.core_type<tc>, window_params = [{transform_indices = @transform_0, window_bounds = array<i64: 1, 8, 128>}, {transform_indices = @transform_1, window_bounds = array<i64: 1, 16, 1>}, {transform_indices = @transform_2, window_bounds = array<i64: 1, 16, 1>}, {pipeline_mode = #tpu.pipeline_mode<synchronous>, transform_indices = @transform_3, window_bounds = array<i64: 16, 24>}, {pipeline_mode = #tpu.pipeline_mode<synchronous>, transform_indices = @transform_4, window_bounds = array<i64: 16, 48>}, {pipeline_mode = #tpu.pipeline_mode<synchronous>, transform_indices = @transform_5, window_bounds = array<i64: 16, 7>}, {pipeline_mode = #tpu.pipeline_mode<synchronous>, transform_indices = @transform_6, window_bounds = array<i64: 16, 16>}, {pipeline_mode = #tpu.pipeline_mode<synchronous>, transform_indices = @transform_7, window_bounds = array<i64: 16, 8>}, {transform_indices = @transform_8, window_bounds = array<i64: 1, 16, 128>}]} {
    %c0 = arith.constant 0 : index
    %c0_0 = arith.constant 0 : index
    %c0_1 = arith.constant 0 : index
    %0 = vector.load %arg1[%c0, %c0_0, %c0_1] : memref<1x8x128xf32, #tpu.memory_space<vmem>>, vector<1x8x128xf32>
    %1 = vector.shape_cast %0 : vector<1x8x128xf32> to vector<8x128xf32>
    %c0_2 = arith.constant 0 : index
    %c0_3 = arith.constant 0 : index
    %2 = vector.load %arg7[%c0_2, %c0_3] : memref<16x16xf32, #tpu.memory_space<vmem>>, vector<16x16xf32>
    %3 = tpu.iota {dimensions = array<i32: 1>} : vector<1x128xi32>
    %c16_i32 = arith.constant 16 : i32
    %4 = vector.broadcast %c16_i32 : i32 to vector<1x128xi32>
    %5 = arith.cmpi slt, %3, %4 : vector<1x128xi32>
    %6 = arith.extui %5 : vector<1x128xi1> to vector<1x128xi32>
    %7 = arith.sitofp %6 : vector<1x128xi32> to vector<1x128xf32>
    %c0_4 = arith.constant 0 : index
    %c0_5 = arith.constant 0 : index
    %8 = vector.load %arg6[%c0_4, %c0_5] : memref<16x7xf32, #tpu.memory_space<vmem>>, vector<16x1xf32>
    %c0_6 = arith.constant 0 : index
    %c1 = arith.constant 1 : index
    %9 = vector.load %arg6[%c0_6, %c1] : memref<16x7xf32, #tpu.memory_space<vmem>>, vector<16x1xf32>
    %c0_7 = arith.constant 0 : index
    %c2 = arith.constant 2 : index
    %10 = vector.load %arg6[%c0_7, %c2] : memref<16x7xf32, #tpu.memory_space<vmem>>, vector<16x1xf32>
    %c0_8 = arith.constant 0 : index
    %c3 = arith.constant 3 : index
    %11 = vector.load %arg6[%c0_8, %c3] : memref<16x7xf32, #tpu.memory_space<vmem>>, vector<16x1xf32>
    %c0_9 = arith.constant 0 : index
    %c4 = arith.constant 4 : index
    %12 = vector.load %arg6[%c0_9, %c4] : memref<16x7xf32, #tpu.memory_space<vmem>>, vector<16x1xf32>
    %c0_10 = arith.constant 0 : index
    %c5 = arith.constant 5 : index
    %13 = vector.load %arg6[%c0_10, %c5] : memref<16x7xf32, #tpu.memory_space<vmem>>, vector<16x1xf32>
    %c1_i32 = arith.constant 1 : i32
    %14 = tpu.dynamic_rotate %1 by %c1_i32 dim 1 : vector<8x128xf32>, i32 -> vector<8x128xf32>
    %c127_i32 = arith.constant 127 : i32
    %15 = tpu.dynamic_rotate %1 by %c127_i32 dim 1 : vector<8x128xf32>, i32 -> vector<8x128xf32>
    %16 = tpu.concatenate %14, %1, %15 in 0 : vector<8x128xf32>, vector<8x128xf32>, vector<8x128xf32> -> vector<24x128xf32>
    %c0_11 = arith.constant 0 : index
    %c0_12 = arith.constant 0 : index
    %17 = vector.load %arg4[%c0_11, %c0_12] : memref<16x24xf32, #tpu.memory_space<vmem>>, vector<16x24xf32>
    %cst = arith.constant dense<0.000000e+00> : vector<16x128xf32>
    %18 = tpu.matmul %17, %16, %cst {dimension_numbers = #tpu.dot_dimension_numbers<[1], [0], [0], [1], [0, 0, 1, 1], [], []>} : vector<16x24xf32>, vector<24x128xf32>, vector<16x128xf32> -> vector<16x128xf32>
    %19 = vector.broadcast %8 : vector<16x1xf32> to vector<16x128xf32>
    %20 = arith.addf %18, %19 : vector<16x128xf32>
    %21 = vector.broadcast %7 : vector<1x128xf32> to vector<16x128xf32>
    %22 = arith.mulf %20, %21 : vector<16x128xf32>
    %cst_13 = arith.constant dense<0.000000e+00> : vector<16xf32>
    %23 = vector.multi_reduction <add>, %22, %cst_13 [1] : vector<16x128xf32> to vector<16xf32>
    %24 = vector.shape_cast %23 : vector<16xf32> to vector<16x1xf32>
    %cst_14 = arith.constant dense<0.000000e+00> : vector<16x1xf32>
    %25 = tpu.matmul %2, %24, %cst_14 {dimension_numbers = #tpu.dot_dimension_numbers<[1], [0], [0], [1], [0, 0, 1, 1], [], []>} : vector<16x16xf32>, vector<16x1xf32>, vector<16x1xf32> -> vector<16x1xf32>
    %cst_15 = arith.constant 6.250000e-02 : f32
    %26 = vector.broadcast %cst_15 : f32 to vector<16x1xf32>
    %27 = arith.mulf %25, %26 : vector<16x1xf32>
    %28 = vector.broadcast %27 : vector<16x1xf32> to vector<16x128xf32>
    %29 = arith.subf %20, %28 : vector<16x128xf32>
    %30 = vector.broadcast %7 : vector<1x128xf32> to vector<16x128xf32>
    %31 = arith.mulf %29, %30 : vector<16x128xf32>
    %32 = arith.mulf %31, %31 : vector<16x128xf32>
    %cst_16 = arith.constant dense<0.000000e+00> : vector<16xf32>
    %33 = vector.multi_reduction <add>, %32, %cst_16 [1] : vector<16x128xf32> to vector<16xf32>
    %34 = vector.shape_cast %33 : vector<16xf32> to vector<16x1xf32>
    %cst_17 = arith.constant dense<0.000000e+00> : vector<16x1xf32>
    %35 = tpu.matmul %2, %34, %cst_17 {dimension_numbers = #tpu.dot_dimension_numbers<[1], [0], [0], [1], [0, 0, 1, 1], [], []>} : vector<16x16xf32>, vector<16x1xf32>, vector<16x1xf32> -> vector<16x1xf32>
    %cst_18 = arith.constant 6.250000e-02 : f32
    %36 = vector.broadcast %cst_18 : f32 to vector<16x1xf32>
    %37 = arith.mulf %35, %36 : vector<16x1xf32>
    %cst_19 = arith.constant 9.99999974E-6 : f32
    %38 = vector.broadcast %cst_19 : f32 to vector<16x1xf32>
    %39 = arith.addf %37, %38 : vector<16x1xf32>
    %40 = math.rsqrt %39 : vector<16x1xf32>
    %41 = vector.broadcast %40 : vector<16x1xf32> to vector<16x128xf32>
    %42 = arith.mulf %29, %41 : vector<16x128xf32>
    %43 = vector.broadcast %9 : vector<16x1xf32> to vector<16x128xf32>
    %44 = arith.mulf %42, %43 : vector<16x128xf32>
    %45 = vector.broadcast %10 : vector<16x1xf32> to vector<16x128xf32>
    %46 = arith.addf %44, %45 : vector<16x128xf32>
    %47 = math.exp %46 : vector<16x128xf32>
    %cst_20 = arith.constant 1.000000e+00 : f32
    %48 = vector.broadcast %cst_20 : f32 to vector<16x128xf32>
    %49 = arith.addf %48, %47 : vector<16x128xf32>
    %cst_21 = arith.constant 1.000000e+00 : f32
    %50 = vector.broadcast %cst_21 : f32 to vector<16x128xf32>
    %51 = arith.addf %50, %47 : vector<16x128xf32>
    %52 = arith.mulf %49, %51 : vector<16x128xf32>
    %cst_22 = arith.constant 1.000000e+00 : f32
    %53 = vector.broadcast %cst_22 : f32 to vector<16x128xf32>
    %54 = arith.subf %52, %53 : vector<16x128xf32>
    %55 = arith.mulf %46, %54 : vector<16x128xf32>
    %cst_23 = arith.constant 1.000000e+00 : f32
    %56 = vector.broadcast %cst_23 : f32 to vector<16x128xf32>
    %57 = arith.addf %52, %56 : vector<16x128xf32>
    %58 = tpu.reciprocal %57 {approx = true} : vector<16x128xf32> -> vector<16x128xf32>
    %59 = arith.mulf %55, %58 : vector<16x128xf32>
    %cst_24 = arith.constant 2.000000e+01 : f32
    %60 = vector.broadcast %cst_24 : f32 to vector<16x128xf32>
    %61 = arith.cmpf ogt, %46, %60 : vector<16x128xf32>
    %62 = arith.select %61, %46, %59 : vector<16x128xi1>, vector<16x128xf32>
    %c0_25 = arith.constant 0 : index
    %c0_26 = arith.constant 0 : index
    %c0_27 = arith.constant 0 : index
    %63 = vector.load %arg2[%c0_25, %c0_26, %c0_27] : memref<1x16x1xf32, #tpu.memory_space<vmem>>, vector<1x16x1xf32>
    %64 = vector.shape_cast %63 : vector<1x16x1xf32> to vector<16x1xf32>
    %65 = vector.broadcast %64 : vector<16x1xf32> to vector<16x128xf32>
    %66 = arith.mulf %65, %62 : vector<16x128xf32>
    %c0_28 = arith.constant 0 : index
    %c0_29 = arith.constant 0 : index
    %c0_30 = arith.constant 0 : index
    %67 = vector.load %arg3[%c0_28, %c0_29, %c0_30] : memref<1x16x1xf32, #tpu.memory_space<vmem>>, vector<1x16x1xf32>
    %68 = vector.shape_cast %67 : vector<1x16x1xf32> to vector<16x1xf32>
    %69 = vector.broadcast %68 : vector<16x1xf32> to vector<16x128xf32>
    %70 = arith.addf %66, %69 : vector<16x128xf32>
    %71 = vector.broadcast %7 : vector<1x128xf32> to vector<16x128xf32>
    %72 = arith.mulf %70, %71 : vector<16x128xf32>
    %c1_i32_31 = arith.constant 1 : i32
    %73 = tpu.dynamic_rotate %72 by %c1_i32_31 dim 1 : vector<16x128xf32>, i32 -> vector<16x128xf32>
    %c127_i32_32 = arith.constant 127 : i32
    %74 = tpu.dynamic_rotate %72 by %c127_i32_32 dim 1 : vector<16x128xf32>, i32 -> vector<16x128xf32>
    %75 = tpu.concatenate %73, %72, %74 in 0 : vector<16x128xf32>, vector<16x128xf32>, vector<16x128xf32> -> vector<48x128xf32>
    %c0_33 = arith.constant 0 : index
    %c0_34 = arith.constant 0 : index
    %76 = vector.load %arg5[%c0_33, %c0_34] : memref<16x48xf32, #tpu.memory_space<vmem>>, vector<16x48xf32>
    %cst_35 = arith.constant dense<0.000000e+00> : vector<16x128xf32>
    %77 = tpu.matmul %76, %75, %cst_35 {dimension_numbers = #tpu.dot_dimension_numbers<[1], [0], [0], [1], [0, 0, 1, 1], [], []>} : vector<16x48xf32>, vector<48x128xf32>, vector<16x128xf32> -> vector<16x128xf32>
    %78 = vector.broadcast %11 : vector<16x1xf32> to vector<16x128xf32>
    %79 = arith.addf %77, %78 : vector<16x128xf32>
    %80 = vector.broadcast %7 : vector<1x128xf32> to vector<16x128xf32>
    %81 = arith.mulf %79, %80 : vector<16x128xf32>
    %cst_36 = arith.constant dense<0.000000e+00> : vector<16xf32>
    %82 = vector.multi_reduction <add>, %81, %cst_36 [1] : vector<16x128xf32> to vector<16xf32>
    %83 = vector.shape_cast %82 : vector<16xf32> to vector<16x1xf32>
    %cst_37 = arith.constant dense<0.000000e+00> : vector<16x1xf32>
    %84 = tpu.matmul %2, %83, %cst_37 {dimension_numbers = #tpu.dot_dimension_numbers<[1], [0], [0], [1], [0, 0, 1, 1], [], []>} : vector<16x16xf32>, vector<16x1xf32>, vector<16x1xf32> -> vector<16x1xf32>
    %cst_38 = arith.constant 6.250000e-02 : f32
    %85 = vector.broadcast %cst_38 : f32 to vector<16x1xf32>
    %86 = arith.mulf %84, %85 : vector<16x1xf32>
    %87 = vector.broadcast %86 : vector<16x1xf32> to vector<16x128xf32>
    %88 = arith.subf %79, %87 : vector<16x128xf32>
    %89 = vector.broadcast %7 : vector<1x128xf32> to vector<16x128xf32>
    %90 = arith.mulf %88, %89 : vector<16x128xf32>
    %91 = arith.mulf %90, %90 : vector<16x128xf32>
    %cst_39 = arith.constant dense<0.000000e+00> : vector<16xf32>
    %92 = vector.multi_reduction <add>, %91, %cst_39 [1] : vector<16x128xf32> to vector<16xf32>
    %93 = vector.shape_cast %92 : vector<16xf32> to vector<16x1xf32>
    %cst_40 = arith.constant dense<0.000000e+00> : vector<16x1xf32>
    %94 = tpu.matmul %2, %93, %cst_40 {dimension_numbers = #tpu.dot_dimension_numbers<[1], [0], [0], [1], [0, 0, 1, 1], [], []>} : vector<16x16xf32>, vector<16x1xf32>, vector<16x1xf32> -> vector<16x1xf32>
    %cst_41 = arith.constant 6.250000e-02 : f32
    %95 = vector.broadcast %cst_41 : f32 to vector<16x1xf32>
    %96 = arith.mulf %94, %95 : vector<16x1xf32>
    %cst_42 = arith.constant 9.99999974E-6 : f32
    %97 = vector.broadcast %cst_42 : f32 to vector<16x1xf32>
    %98 = arith.addf %96, %97 : vector<16x1xf32>
    %99 = math.rsqrt %98 : vector<16x1xf32>
    %100 = vector.broadcast %99 : vector<16x1xf32> to vector<16x128xf32>
    %101 = arith.mulf %88, %100 : vector<16x128xf32>
    %102 = vector.broadcast %12 : vector<16x1xf32> to vector<16x128xf32>
    %103 = arith.mulf %101, %102 : vector<16x128xf32>
    %104 = vector.broadcast %13 : vector<16x1xf32> to vector<16x128xf32>
    %105 = arith.addf %103, %104 : vector<16x128xf32>
    %106 = math.exp %105 : vector<16x128xf32>
    %cst_43 = arith.constant 1.000000e+00 : f32
    %107 = vector.broadcast %cst_43 : f32 to vector<16x128xf32>
    %108 = arith.addf %107, %106 : vector<16x128xf32>
    %cst_44 = arith.constant 1.000000e+00 : f32
    %109 = vector.broadcast %cst_44 : f32 to vector<16x128xf32>
    %110 = arith.addf %109, %106 : vector<16x128xf32>
    %111 = arith.mulf %108, %110 : vector<16x128xf32>
    %cst_45 = arith.constant 1.000000e+00 : f32
    %112 = vector.broadcast %cst_45 : f32 to vector<16x128xf32>
    %113 = arith.subf %111, %112 : vector<16x128xf32>
    %114 = arith.mulf %105, %113 : vector<16x128xf32>
    %cst_46 = arith.constant 1.000000e+00 : f32
    %115 = vector.broadcast %cst_46 : f32 to vector<16x128xf32>
    %116 = arith.addf %111, %115 : vector<16x128xf32>
    %117 = tpu.reciprocal %116 {approx = true} : vector<16x128xf32> -> vector<16x128xf32>
    %118 = arith.mulf %114, %117 : vector<16x128xf32>
    %cst_47 = arith.constant 2.000000e+01 : f32
    %119 = vector.broadcast %cst_47 : f32 to vector<16x128xf32>
    %120 = arith.cmpf ogt, %105, %119 : vector<16x128xf32>
    %121 = arith.select %120, %105, %118 : vector<16x128xi1>, vector<16x128xf32>
    %c0_48 = arith.constant 0 : index
    %c0_49 = arith.constant 0 : index
    %122 = vector.load %arg8[%c0_48, %c0_49] : memref<16x8xf32, #tpu.memory_space<vmem>>, vector<16x8xf32>
    %cst_50 = arith.constant dense<0.000000e+00> : vector<16x128xf32>
    %123 = tpu.matmul %122, %1, %cst_50 {dimension_numbers = #tpu.dot_dimension_numbers<[1], [0], [0], [1], [0, 0, 1, 1], [], []>} : vector<16x8xf32>, vector<8x128xf32>, vector<16x128xf32> -> vector<16x128xf32>
    %c0_51 = arith.constant 0 : index
    %c6 = arith.constant 6 : index
    %124 = vector.load %arg6[%c0_51, %c6] : memref<16x7xf32, #tpu.memory_space<vmem>>, vector<16x1xf32>
    %125 = vector.broadcast %124 : vector<16x1xf32> to vector<16x128xf32>
    %126 = arith.addf %123, %125 : vector<16x128xf32>
    %127 = arith.addf %121, %126 : vector<16x128xf32>
    %c0_52 = arith.constant 0 : index
    %c0_53 = arith.constant 0 : index
    %c0_54 = arith.constant 0 : index
    %128 = vector.load %arg9[%c0_52, %c0_53, %c0_54] : memref<1x16x128xf32, #tpu.memory_space<vmem>>, vector<1x16x128xf32>
    %129 = vector.shape_cast %128 : vector<1x16x128xf32> to vector<16x128xf32>
    %130 = vector.shape_cast %127 : vector<16x128xf32> to vector<1x16x128xf32>
    tpu.vector_store %arg9[%c0_52, %c0_53, %c0_54], %130 {strides = array<i32>} : memref<1x16x128xf32, #tpu.memory_space<vmem>>, vector<1x16x128xf32>,
    return
  }
  func.func @transform_0(%arg0: i32) -> (i32, i32, i32) {
    %c0_i32 = arith.constant 0 : i32
    %c0_i32_0 = arith.constant 0 : i32
    %c0_i32_1 = arith.constant 0 : i32
    return %arg0, %c0_i32, %c0_i32_0 : i32, i32, i32
  }
  func.func @transform_1(%arg0: i32) -> (i32, i32, i32) {
    %c0_i32 = arith.constant 0 : i32
    %c0_i32_0 = arith.constant 0 : i32
    %c0_i32_1 = arith.constant 0 : i32
    return %arg0, %c0_i32, %c0_i32_0 : i32, i32, i32
  }
  func.func @transform_2(%arg0: i32) -> (i32, i32, i32) {
    %c0_i32 = arith.constant 0 : i32
    %c0_i32_0 = arith.constant 0 : i32
    %c0_i32_1 = arith.constant 0 : i32
    return %arg0, %c0_i32, %c0_i32_0 : i32, i32, i32
  }
  func.func @transform_3(%arg0: i32) -> (i32, i32) {
    %c0_i32 = arith.constant 0 : i32
    %c0_i32_0 = arith.constant 0 : i32
    %c0_i32_1 = arith.constant 0 : i32
    return %c0_i32, %c0_i32_0 : i32, i32
  }
  func.func @transform_4(%arg0: i32) -> (i32, i32) {
    %c0_i32 = arith.constant 0 : i32
    %c0_i32_0 = arith.constant 0 : i32
    %c0_i32_1 = arith.constant 0 : i32
    return %c0_i32, %c0_i32_0 : i32, i32
  }
  func.func @transform_5(%arg0: i32) -> (i32, i32) {
    %c0_i32 = arith.constant 0 : i32
    %c0_i32_0 = arith.constant 0 : i32
    %c0_i32_1 = arith.constant 0 : i32
    return %c0_i32, %c0_i32_0 : i32, i32
  }
  func.func @transform_6(%arg0: i32) -> (i32, i32) {
    %c0_i32 = arith.constant 0 : i32
    %c0_i32_0 = arith.constant 0 : i32
    %c0_i32_1 = arith.constant 0 : i32
    return %c0_i32, %c0_i32_0 : i32, i32
  }
  func.func @transform_7(%arg0: i32) -> (i32, i32) {
    %c0_i32 = arith.constant 0 : i32
    %c0_i32_0 = arith.constant 0 : i32
    %c0_i32_1 = arith.constant 0 : i32
    return %c0_i32, %c0_i32_0 : i32, i32
  }
  func.func @transform_8(%arg0: i32) -> (i32, i32, i32) {
    %c0_i32 = arith.constant 0 : i32
    %c0_i32_0 = arith.constant 0 : i32
    %c0_i32_1 = arith.constant 0 : i32
    return %arg0, %c0_i32, %c0_i32_0 : i32, i32, i32
  }
}

</mosaic_0001>

<llo_original>
// kernel: tpu_custom_call.1
$region0: #{tpu_custom_call.1}
  #allocation0 [shape = 'u32[]', space=smem, size = 0x4, offset = 0x4, fixed_abs, tag = 'smem constant byte address 0x4 - core index']
  #allocation1 [shape = 'u32[144,128]{1,0:T(1,128)}', space=vmem, size = 0x12000, scoped, tag = 'internal scratch']
  %s0 = inlined_call_operand.vmem [shape: f32[2,8,128], index: 0, kind: input, shape index: {}]
  %s1 = inlined_call_operand.vmem [shape: f32[2,16,1], index: 1, kind: input, shape index: {}]
  %s2 = inlined_call_operand.vmem [shape: f32[2,16,1], index: 2, kind: input, shape index: {}]
  %s3 = inlined_call_operand.vmem [shape: f32[16,24], index: 3, kind: input, shape index: {}]
  %s4 = inlined_call_operand.vmem [shape: f32[16,48], index: 4, kind: input, shape index: {}]
  %s5 = inlined_call_operand.vmem [shape: f32[16,7], index: 5, kind: input, shape index: {}]
  %s6 = inlined_call_operand.vmem [shape: f32[16,16], index: 6, kind: input, shape index: {}]
  %s7 = inlined_call_operand.vmem [shape: f32[16,8], index: 7, kind: input, shape index: {}]
  %s8 = inlined_call_operand.hbm [shape: f32[2,16,128], index: 8, kind: output, shape index: {}]
  %s9 = sld [smem:[#allocation0]]
  $region65: #{tpu_custom_call.1} parent=0
    _
  %s11 = ssub.s32 1, %s9
  %s12 = scalar_select 0, %s11, %s9
  $region1: #{tpu_custom_call.1} parent=0
    #allocation2 [shape = 'u8[16384]{0}', space=vmem, size = 0x4000, scoped, tag = 'output window, operand 0']
    #allocation3 [shape = 's32[2]{0}', space=sflag, size = 0x8, scoped, tag = 'scoped memory for tpu_custom_call.1']
    %13 = vsyncpa [#allocation3], 0
    %s14 = scalar_lea.sflag [#allocation3], 1
    %15 = vsyncpa %s14, 0
    loop: start=0, step=1, limit=4
    $region2: #{tpu_custom_call.1} parent=1 // loop_pre_header
      _
    $region3: #{tpu_custom_call.1} parent=1 // loop_header
      %s17 = sphi 0, %s21
      %p18 = scmp.ge.s32.totalorder %s17, 4
      %s27 = sphi 0, %s29
      %s30 = sphi 0, %s27
      %s31 = sphi 0, %s30
      %s47 = sphi 0, %s31
      %s53 = sphi 0, %s55
      %s56 = sphi 0, %s53
      %s57 = sphi 0, %s56
      %s73 = sphi 0, %s57
      %s79 = sphi 0, %s81
      %s82 = sphi 0, %s79
      %s83 = sphi 0, %s82
      %s99 = sphi 0, %s83
      %s103 = sphi 0, %s103
      %s105 = sphi 0, %s103
      %s106 = sphi 0, %s105
      %s120 = sphi 0, %s106
      %s124 = sphi 0, %s124
      %s126 = sphi 0, %s124
      %s127 = sphi 0, %s126
      %s141 = sphi 0, %s127
      %s145 = sphi 0, %s145
      %s147 = sphi 0, %s145
      %s148 = sphi 0, %s147
      %s162 = sphi 0, %s148
      %s166 = sphi 0, %s166
      %s168 = sphi 0, %s166
      %s169 = sphi 0, %s168
      %s183 = sphi 0, %s169
      %s187 = sphi 0, %s187
      %s189 = sphi 0, %s187
      %s190 = sphi 0, %s189
      %s204 = sphi 0, %s190
      %s210 = sphi 0, %s212
      %s213 = sphi 0, %s210
      %s214 = sphi 0, %s213
      %s230 = sphi 0, %s214
    $region4: #{tpu_custom_call.1} parent=1 // loop_header_branch
      %20 = sbr.rel (%p18) target = $region8
    $region5: #{tpu_custom_call.1} parent=1 // loop_body
      %s22 = ssub.s32 %s17, 1
      %s23 = ssub.s32 %s17, 2
      %s24 = sadd.s32 %s17, 1
      %s25 = ssub.s32 %s17, %s24
      %p26 = scmp.eq.s32.totalorder %s25, 0
      %s28 = sadd.s32 %s27, 1
      %s29 = scalar_select %p26, %s27, %s28
      %p32 = pneg %p26
      %p33 = scmp.eq.s32.totalorder %s17, 1
      %p34 = por %p32, %p33
      %p35 = scmp.ne.s32.totalorder %s27, %s30
      %p36 = scmp.eq.s32.totalorder %s17, 0
      %p37 = por %p35, %p36
      %p38 = scmp.ne.s32.totalorder %s27, %s30
      %p39 = scmp.eq.s32.totalorder %s22, 1
      %p40 = por %p38, %p39
      %p41 = scmp.ne.s32.totalorder %s30, %s31
      %p42 = scmp.eq.s32.totalorder %s22, 0
      %p43 = por %p41, %p42
      %p44 = scmp.ne.s32.totalorder %s30, %s31
      %p45 = scmp.eq.s32.totalorder %s23, 1
      %p46 = por %p44, %p45
      %p48 = scmp.ne.s32.totalorder %s31, %s47
      %p49 = scmp.eq.s32.totalorder %s23, 0
      %p50 = por %p48, %p49
      %s51 = ssub.s32 %s17, %s24
      %p52 = scmp.eq.s32.totalorder %s51, 0
      %s54 = sadd.s32 %s53, 1
      %s55 = scalar_select %p52, %s53, %s54
      %p58 = pneg %p52
      %p59 = scmp.eq.s32.totalorder %s17, 1
      %p60 = por %p58, %p59
      %p61 = scmp.ne.s32.totalorder %s53, %s56
      %p62 = scmp.eq.s32.totalorder %s17, 0
      %p63 = por %p61, %p62
      %p64 = scmp.ne.s32.totalorder %s53, %s56
      %p65 = scmp.eq.s32.totalorder %s22, 1
      %p66 = por %p64, %p65
      %p67 = scmp.ne.s32.totalorder %s56, %s57
      %p68 = scmp.eq.s32.totalorder %s22, 0
      %p69 = por %p67, %p68
      %p70 = scmp.ne.s32.totalorder %s56, %s57
      %p71 = scmp.eq.s32.totalorder %s23, 1
      %p72 = por %p70, %p71
      %p74 = scmp.ne.s32.totalorder %s57, %s73
      %p75 = scmp.eq.s32.totalorder %s23, 0
      %p76 = por %p74, %p75
      %s77 = ssub.s32 %s17, %s24
      %p78 = scmp.eq.s32.totalorder %s77, 0
      %s80 = sadd.s32 %s79, 1
      %s81 = scalar_select %p78, %s79, %s80
      %p84 = pneg %p78
      %p85 = scmp.eq.s32.totalorder %s17, 1
      %p86 = por %p84, %p85
      %p87 = scmp.ne.s32.totalorder %s79, %s82
      %p88 = scmp.eq.s32.totalorder %s17, 0
      %p89 = por %p87, %p88
      %p90 = scmp.ne.s32.totalorder %s79, %s82
      %p91 = scmp.eq.s32.totalorder %s22, 1
      %p92 = por %p90, %p91
      %p93 = scmp.ne.s32.totalorder %s82, %s83
      %p94 = scmp.eq.s32.totalorder %s22, 0
      %p95 = por %p93, %p94
      %p96 = scmp.ne.s32.totalorder %s82, %s83
      %p97 = scmp.eq.s32.totalorder %s23, 1
      %p98 = por %p96, %p97
      %p100 = scmp.ne.s32.totalorder %s83, %s99
      %p101 = scmp.eq.s32.totalorder %s23, 0
      %p102 = por %p100, %p101
      %s104 = sadd.s32 %s103, 1
      %p107 = scmp.eq.s32.totalorder %s17, 1
      %p108 = scmp.ne.s32.totalorder %s103, %s105
      %p109 = scmp.eq.s32.totalorder %s17, 0
      %p110 = por %p108, %p109
      %p111 = scmp.ne.s32.totalorder %s103, %s105
      %p112 = scmp.eq.s32.totalorder %s22, 1
      %p113 = por %p111, %p112
      %p114 = scmp.ne.s32.totalorder %s105, %s106
      %p115 = scmp.eq.s32.totalorder %s22, 0
      %p116 = por %p114, %p115
      %p117 = scmp.ne.s32.totalorder %s105, %s106
      %p118 = scmp.eq.s32.totalorder %s23, 1
      %p119 = por %p117, %p118
      %p121 = scmp.ne.s32.totalorder %s106, %s120
      %p122 = scmp.eq.s32.totalorder %s23, 0
      %p123 = por %p121, %p122
      %s125 = sadd.s32 %s124, 1
      %p128 = scmp.eq.s32.totalorder %s17, 1
      %p129 = scmp.ne.s32.totalorder %s124, %s126
      %p130 = scmp.eq.s32.totalorder %s17, 0
      %p131 = por %p129, %p130
      %p132 = scmp.ne.s32.totalorder %s124, %s126
      %p133 = scmp.eq.s32.totalorder %s22, 1
      %p134 = por %p132, %p133
      %p135 = scmp.ne.s32.totalorder %s126, %s127
      %p136 = scmp.eq.s32.totalorder %s22, 0
      %p137 = por %p135, %p136
      %p138 = scmp.ne.s32.totalorder %s126, %s127
      %p139 = scmp.eq.s32.totalorder %s23, 1
      %p140 = por %p138, %p139
      %p142 = scmp.ne.s32.totalorder %s127, %s141
      %p143 = scmp.eq.s32.totalorder %s23, 0
      %p144 = por %p142, %p143
      %s146 = sadd.s32 %s145, 1
      %p149 = scmp.eq.s32.totalorder %s17, 1
      %p150 = scmp.ne.s32.totalorder %s145, %s147
      %p151 = scmp.eq.s32.totalorder %s17, 0
      %p152 = por %p150, %p151
      %p153 = scmp.ne.s32.totalorder %s145, %s147
      %p154 = scmp.eq.s32.totalorder %s22, 1
      %p155 = por %p153, %p154
      %p156 = scmp.ne.s32.totalorder %s147, %s148
      %p157 = scmp.eq.s32.totalorder %s22, 0
      %p158 = por %p156, %p157
      %p159 = scmp.ne.s32.totalorder %s147, %s148
      %p160 = scmp.eq.s32.totalorder %s23, 1
      %p161 = por %p159, %p160
      %p163 = scmp.ne.s32.totalorder %s148, %s162
      %p164 = scmp.eq.s32.totalorder %s23, 0
      %p165 = por %p163, %p164
      %s167 = sadd.s32 %s166, 1
      %p170 = scmp.eq.s32.totalorder %s17, 1
      %p171 = scmp.ne.s32.totalorder %s166, %s168
      %p172 = scmp.eq.s32.totalorder %s17, 0
      %p173 = por %p171, %p172
      %p174 = scmp.ne.s32.totalorder %s166, %s168
      %p175 = scmp.eq.s32.totalorder %s22, 1
      %p176 = por %p174, %p175
      %p177 = scmp.ne.s32.totalorder %s168, %s169
      %p178 = scmp.eq.s32.totalorder %s22, 0
      %p179 = por %p177, %p178
      %p180 = scmp.ne.s32.totalorder %s168, %s169
      %p181 = scmp.eq.s32.totalorder %s23, 1
      %p182 = por %p180, %p181
      %p184 = scmp.ne.s32.totalorder %s169, %s183
      %p185 = scmp.eq.s32.totalorder %s23, 0
      %p186 = por %p184, %p185
      %s188 = sadd.s32 %s187, 1
      %p191 = scmp.eq.s32.totalorder %s17, 1
      %p192 = scmp.ne.s32.totalorder %s187, %s189
      %p193 = scmp.eq.s32.totalorder %s17, 0
      %p194 = por %p192, %p193
      %p195 = scmp.ne.s32.totalorder %s187, %s189
      %p196 = scmp.eq.s32.totalorder %s22, 1
      %p197 = por %p195, %p196
      %p198 = scmp.ne.s32.totalorder %s189, %s190
      %p199 = scmp.eq.s32.totalorder %s22, 0
      %p200 = por %p198, %p199
      %p201 = scmp.ne.s32.totalorder %s189, %s190
      %p202 = scmp.eq.s32.totalorder %s23, 1
      %p203 = por %p201, %p202
      %p205 = scmp.ne.s32.totalorder %s190, %s204
      %p206 = scmp.eq.s32.totalorder %s23, 0
      %p207 = por %p205, %p206
      %s208 = ssub.s32 %s17, %s24
      %p209 = scmp.eq.s32.totalorder %s208, 0
      %s211 = sadd.s32 %s210, 1
      %s212 = scalar_select %p209, %s210, %s211
      %p215 = pneg %p209
      %p216 = scmp.eq.s32.totalorder %s17, 1
      %p217 = por %p215, %p216
      %p218 = scmp.ne.s32.totalorder %s210, %s213
      %p219 = scmp.eq.s32.totalorder %s17, 0
      %p220 = por %p218, %p219
      %p221 = scmp.ne.s32.totalorder %s210, %s213
      %p222 = scmp.eq.s32.totalorder %s22, 1
      %p223 = por %p221, %p222
      %p224 = scmp.ne.s32.totalorder %s213, %s214
      %p225 = scmp.eq.s32.totalorder %s22, 0
      %p226 = por %p224, %p225
      %p227 = scmp.ne.s32.totalorder %s213, %s214
      %p228 = scmp.eq.s32.totalorder %s23, 1
      %p229 = por %p227, %p228
      %p231 = scmp.ne.s32.totalorder %s214, %s230
      %p232 = scmp.eq.s32.totalorder %s23, 0
      %p233 = por %p231, %p232
      %p234 = scmp.le.s32.totalorder 1, %s17
      %p235 = scmp.lt.s32.totalorder %s17, 3
      %p236 = pnand %p234, %p235
      %p237 = pneg %p236
      // Predicated region
      $region9: #{tpu_custom_call.1} parent=5 // pred_check
        _
      $region10: #{tpu_custom_call.1} parent=5 // pred_check_branch
        %239 = sbr.rel (%p236) target = $region12
      $region11: #{tpu_custom_call.1} parent=5 // pred_region
        %s240 = ssub.s32 %s17, 1
        // Predicated region
        $region13: #{tpu_custom_call.1} parent=11 // pred_check
          %p241 = pneg %p116
        $region14: #{tpu_custom_call.1} parent=11 // pred_check_branch
          %243 = sbr.rel (%p241) target = $region16
        $region15: #{tpu_custom_call.1} parent=11 // pred_region
          _
        $region16: #{tpu_custom_call.1} parent=11 // pred_fallthru
          _
        // Predicated region
        $region17: #{tpu_custom_call.1} parent=11 // pred_check
          %p244 = pneg %p137
        $region18: #{tpu_custom_call.1} parent=11 // pred_check_branch
          %246 = sbr.rel (%p244) target = $region20
        $region19: #{tpu_custom_call.1} parent=11 // pred_region
          _
        $region20: #{tpu_custom_call.1} parent=11 // pred_fallthru
          _
        // Predicated region
        $region21: #{tpu_custom_call.1} parent=11 // pred_check
          %p247 = pneg %p158
        $region22: #{tpu_custom_call.1} parent=11 // pred_check_branch
          %249 = sbr.rel (%p247) target = $region24
        $region23: #{tpu_custom_call.1} parent=11 // pred_region
          _
        $region24: #{tpu_custom_call.1} parent=11 // pred_fallthru
          _
        // Predicated region
        $region25: #{tpu_custom_call.1} parent=11 // pred_check
          %p250 = pneg %p179
        $region26: #{tpu_custom_call.1} parent=11 // pred_check_branch
          %252 = sbr.rel (%p250) target = $region28
        $region27: #{tpu_custom_call.1} parent=11 // pred_region
          _
        $region28: #{tpu_custom_call.1} parent=11 // pred_fallthru
          _
        // Predicated region
        $region29: #{tpu_custom_call.1} parent=11 // pred_check
          %p253 = pneg %p200
        $region30: #{tpu_custom_call.1} parent=11 // pred_check_branch
          %255 = sbr.rel (%p253) target = $region32
        $region31: #{tpu_custom_call.1} parent=11 // pred_region
          _
        $region32: #{tpu_custom_call.1} parent=11 // pred_fallthru
          _
      $region12: #{tpu_custom_call.1} parent=5 // pred_fallthru
        _
      %p256 = scmp.lt.s32.totalorder %s17, 2
      // Predicated region
      $region33: #{tpu_custom_call.1} parent=5 // pred_check
        %p257 = pneg %p256
      $region34: #{tpu_custom_call.1} parent=5 // pred_check_branch
        %259 = sbr.rel (%p257) target = $region36
      $region35: #{tpu_custom_call.1} parent=5 // pred_region
        // Predicated region
        $region37: #{tpu_custom_call.1} parent=35 // pred_check
          %p260 = pneg %p37
        $region38: #{tpu_custom_call.1} parent=35 // pred_check_branch
          %262 = sbr.rel (%p260) target = $region40
        $region39: #{tpu_custom_call.1} parent=35 // pred_region
          %p263 = scmp.lt.s32.totalorder %s17, 1
          %s264 = scalar_select %p263, %s17, 1
          %s265 = smul.addr %s264, 8
          %s266 = scalar_lea.vmem %s0, %s265
        $region40: #{tpu_custom_call.1} parent=35 // pred_fallthru
          _
        // Predicated region
        $region41: #{tpu_custom_call.1} parent=35 // pred_check
          %p267 = pneg %p63
        $region42: #{tpu_custom_call.1} parent=35 // pred_check_branch
          %269 = sbr.rel (%p267) target = $region44
        $region43: #{tpu_custom_call.1} parent=35 // pred_region
          %p270 = scmp.lt.s32.totalorder %s17, 1
          %s271 = scalar_select %p270, %s17, 1
          %s272 = smul.addr %s271, 2
          %s273 = smul.addr %s272, 8
          %s274 = scalar_lea.vmem %s1, %s273
        $region44: #{tpu_custom_call.1} parent=35 // pred_fallthru
          _
        // Predicated region
        $region45: #{tpu_custom_call.1} parent=35 // pred_check
          %p275 = pneg %p89
        $region46: #{tpu_custom_call.1} parent=35 // pred_check_branch
          %277 = sbr.rel (%p275) target = $region48
        $region47: #{tpu_custom_call.1} parent=35 // pred_region
          %p278 = scmp.lt.s32.totalorder %s17, 1
          %s279 = scalar_select %p278, %s17, 1
          %s280 = smul.addr %s279, 2
          %s281 = smul.addr %s280, 8
          %s282 = scalar_lea.vmem %s2, %s281
        $region48: #{tpu_custom_call.1} parent=35 // pred_fallthru
          _
      $region36: #{tpu_custom_call.1} parent=5 // pred_fallthru
        _
      %p283 = scmp.le.s32.totalorder 1, %s17
      %p284 = scmp.lt.s32.totalorder %s17, 3
      %p285 = pnand %p283, %p284
      %p286 = pneg %p285
      // Predicated region
      $region49: #{tpu_custom_call.1} parent=5 // pred_check
        _
      $region50: #{tpu_custom_call.1} parent=5 // pred_check_branch
        %288 = sbr.rel (%p285) target = $region52
      $region51: #{tpu_custom_call.1} parent=5 // pred_region
        %s289 = ssub.s32 %s17, 1
        %p290 = scmp.lt.s32.totalorder %s22, 1
        %s291 = scalar_select %p290, %s22, 1
        %s292 = smul.addr %s291, 8
        %s293 = scalar_lea.vmem %s0, %s292
        %p294 = pneg %p43
        %p295 = pneg %p40
        %p296 = scmp.lt.s32.totalorder %s22, 1
        %s297 = scalar_select %p296, %s22, 1
        %s298 = smul.addr %s297, 2
        %s299 = smul.addr %s298, 8
        %s300 = scalar_lea.vmem %s1, %s299
        %p301 = pneg %p69
        %p302 = pneg %p66
        %p303 = scmp.lt.s32.totalorder %s22, 1
        %s304 = scalar_select %p303, %s22, 1
        %s305 = smul.addr %s304, 2
        %s306 = smul.addr %s305, 8
        %s307 = scalar_lea.vmem %s2, %s306
        %p308 = pneg %p95
        %p309 = pneg %p92
        %p310 = pneg %p116
        %p311 = pneg %p113
        %p312 = pneg %p137
        %p313 = pneg %p134
        %p314 = pneg %p158
        %p315 = pneg %p155
        %p316 = pneg %p179
        %p317 = pneg %p176
        %p318 = pneg %p200
        %p319 = pneg %p197
        %p320 = pneg %p226
        %p321 = pneg %p223
        %s322 = sand.u32 %s213, 1
        %s323 = scalar_lea.sflag [#allocation3], %s322
        %s324 = sand.u32 %s213, 1
        %s325 = smul.addr %s324, 16
        %s326 = scalar_lea.vmem [#allocation2], %s325
        %p327 = scmp.lt.s32.totalorder %s22, 1
        %s328 = scalar_select %p327, %s22, 1
        %s329 = smul.addr %s328, 8
        %s330 = scalar_lea.vmem %s0, %s329
        %p331 = scmp.lt.s32.totalorder %s22, 1
        %s332 = scalar_select %p331, %s22, 1
        %s333 = smul.addr %s332, 2
        %s334 = smul.addr %s333, 8
        %s335 = scalar_lea.vmem %s1, %s334
        %p336 = scmp.lt.s32.totalorder %s22, 1
        %s337 = scalar_select %p336, %s22, 1
        %s338 = smul.addr %s337, 2
        %s339 = smul.addr %s338, 8
        %s340 = scalar_lea.vmem %s2, %s339
        %v341 = vld [vmem:[%s330] sm:$0xff]
        %v342 = vld [vmem:[%s6] sm:$0xff]
        %v343 = vld [vmem:[%s6 + $0x8] sm:$0xff]
        %v344 = vlaneseq
        %v345 = vand.u32 %v344, 127
        %vm346 = vcmp.lt.s32.totalorder %v345, 16
        %v347 = vsel %vm346, 1, 0
        %v348 = vcvt.s32.f32 %v347
        %v349 = vld [vmem:[%s5] sm:$0xff]
        %v350 = vld [vmem:[%s5 + $0x8] sm:$0xff]
        %351 = vrot.lane.b32.xlu0 %v341, 1
        %v352 = vpop.permute.xlu0 %351
        %353 = vrot.lane.b32.xlu0 %v341, 127
        %v354 = vpop.permute.xlu0 %353
        %v355 = vld [vmem:[%s3] sm:$0xff]
        %v356 = vld [vmem:[%s3 + $0x8] sm:$0xff]
        %358 = vset.pattern.permute.xlu0 0
        %359 = vperm.xlu0 %358, %v349
        %v360 = vpop.permute.xlu0 %359
        %363 = vset.pattern.permute.xlu0 0
        %364 = vperm.xlu0 %363, %v350
        %v365 = vpop.permute.xlu0 %364
        %vm367 = vcmask 195584
        %v369 = vsel %vm367, %v355, 0
        %v372 = vsel %vm367, %v356, 0
        %374 = vmatprep.subr.mxu0 0.0
        %375 = vmatpush1.msra.mxu0 0.0
        %376 = vmatprep.subr.mxu0 0.0
        %377 = vmatpush1.msra.mxu0 0.0
        %378 = vmatprep.subr.mxu0 0.0
        %379 = vmatpush1.msra.mxu0 0.0
        %380 = vmatprep.subr.mxu0 0.0
        %381 = vmatpush1.msra.mxu0 0.0
        %382 = vmatprep.subr.mxu0 0.0
        %383 = vmatpush1.msra.mxu0 0.0
        %384 = vmatprep.subr.mxu0 0.0
        %385 = vmatpush1.msra.mxu0 0.0
        %386 = vmatprep.subr.mxu0 0.0
        %387 = vmatpush1.msra.mxu0 0.0
        %388 = vmatprep.subr.mxu0 0.0
        %389 = vmatpush1.msra.mxu0 0.0
        %390 = vmatprep.subr.mxu0 0.0
        %391 = vmatpush1.msra.mxu0 0.0
        %392 = vmatprep.subr.mxu0 0.0
        %393 = vmatpush1.msra.mxu0 0.0
        %394 = vmatprep.subr.mxu0 0.0
        %395 = vmatpush1.msra.mxu0 0.0
        %396 = vmatprep.subr.mxu0 0.0
        %397 = vmatpush1.msra.mxu0 0.0
        %398 = vmatprep.subr.mxu0 0.0
        %399 = vmatpush1.msra.mxu0 0.0
        %400 = vmatprep.subr.mxu0 0.0
        %401 = vmatpush1.msra.mxu0 %v354
        %402 = vmatprep.subr.mxu0 0.0
        %403 = vmatpush1.msra.mxu0 %v341
        %404 = vmatprep.subr.mxu0 0.0
        %405 = vmatpush1.msra.mxu0 %v352
        %406 = vmatprep.subr.mxu0 0.0
        %407 = vmatpush2.msra.mxu0 0.0
        %408 = vmatprep.subr.mxu0 0.0
        %409 = vmatpush2.msra.mxu0 0.0
        %410 = vmatprep.subr.mxu0 0.0
        %411 = vmatpush2.msra.mxu0 0.0
        %412 = vmatprep.subr.mxu0 0.0
        %413 = vmatpush2.msra.mxu0 0.0
        %414 = vmatprep.subr.mxu0 0.0
        %415 = vmatpush2.msra.mxu0 0.0
        %416 = vmatprep.subr.mxu0 0.0
        %417 = vmatpush2.msra.mxu0 0.0
        %418 = vmatprep.subr.mxu0 0.0
        %419 = vmatpush2.msra.mxu0 0.0
        %420 = vmatprep.subr.mxu0 0.0
        %421 = vmatpush2.msra.mxu0 0.0
        %422 = vmatprep.subr.mxu0 0.0
        %423 = vmatpush2.msra.mxu0 0.0
        %424 = vmatprep.subr.mxu0 0.0
        %425 = vmatpush2.msra.mxu0 0.0
        %426 = vmatprep.subr.mxu0 0.0
        %427 = vmatpush2.msra.mxu0 0.0
        %428 = vmatprep.subr.mxu0 0.0
        %429 = vmatpush2.msra.mxu0 0.0
        %430 = vmatprep.subr.mxu0 0.0
        %431 = vmatpush2.msra.mxu0 0.0
        %432 = vmatprep.subr.mxu0 0.0
        %433 = vmatpush2.msra.mxu0 0.0
        %434 = vmatprep.subr.mxu0 0.0
        %435 = vmatpush2.msra.mxu0 0.0
        %436 = vmatprep.subr.mxu0 0.0
        %437 = vmatpush2.msra.mxu0 0.0
        %438 = vmatprep.mubr.f32.mxu0 0.0
        %439 = vmatmul.mubr.f32.gmra.mxu0 %v369
        %v440 = vpop.f32.mrf.mxu0
        %v441 = vadd.f32 %v360, %v440
        %v442 = vpop.f32.mrf.mxu0
        %443 = vmatprep.mubr.f32.mxu0 0.0
        %444 = vmatmul.mubr.f32.gmra.mxu0 %v372
        %v445 = vpop.f32.mrf.mxu0
        %v446 = vadd.f32 %v365, %v445
        %v447 = vpop.f32.mrf.mxu0
        %448 = vdwg.mxu0
        %v449 = vmul.f32 %v441, %v348
        %v450 = vmul.f32 %v446, %v348
        %451 = vadd.xlane.f32.xlu0 %v449
        %v452 = vpop.xlane.xlu0 %451
        %453 = vadd.xlane.f32.xlu0 %v450
        %v454 = vpop.xlane.xlu0 %453
        %vm455 = vcmask 130048
        %v457 = vsel %vm455, %v342, 0
        %v460 = vsel %vm455, %v343, 0
        %462 = vmatprep.subr.mxu0 0.0
        %463 = vmatpush1.msra.mxu0 0.0
        %464 = vmatprep.subr.mxu0 0.0
        %465 = vmatpush1.msra.mxu0 0.0
        %466 = vmatprep.subr.mxu0 0.0
        %467 = vmatpush1.msra.mxu0 0.0
        %468 = vmatprep.subr.mxu0 0.0
        %469 = vmatpush1.msra.mxu0 0.0
        %470 = vmatprep.subr.mxu0 0.0
        %471 = vmatpush1.msra.mxu0 0.0
        %472 = vmatprep.subr.mxu0 0.0
        %473 = vmatpush1.msra.mxu0 0.0
        %474 = vmatprep.subr.mxu0 0.0
        %475 = vmatpush1.msra.mxu0 0.0
        %476 = vmatprep.subr.mxu0 0.0
        %477 = vmatpush1.msra.mxu0 0.0
        %478 = vmatprep.subr.mxu0 0.0
        %479 = vmatpush1.msra.mxu0 0.0
        %480 = vmatprep.subr.mxu0 0.0
        %481 = vmatpush1.msra.mxu0 0.0
        %482 = vmatprep.subr.mxu0 0.0
        %483 = vmatpush1.msra.mxu0 0.0
        %484 = vmatprep.subr.mxu0 0.0
        %485 = vmatpush1.msra.mxu0 0.0
        %486 = vmatprep.subr.mxu0 0.0
        %487 = vmatpush1.msra.mxu0 0.0
        %488 = vmatprep.subr.mxu0 0.0
        %489 = vmatpush1.msra.mxu0 0.0
        %490 = vmatprep.subr.mxu0 0.0
        %491 = vmatpush1.msra.mxu0 %v454
        %492 = vmatprep.subr.mxu0 0.0
        %493 = vmatpush1.msra.mxu0 %v452
        %494 = vmatprep.subr.mxu0 0.0
        %495 = vmatpush2.msra.mxu0 0.0
        %496 = vmatprep.subr.mxu0 0.0
        %497 = vmatpush2.msra.mxu0 0.0
        %498 = vmatprep.subr.mxu0 0.0
        %499 = vmatpush2.msra.mxu0 0.0
        %500 = vmatprep.subr.mxu0 0.0
        %501 = vmatpush2.msra.mxu0 0.0
        %502 = vmatprep.subr.mxu0 0.0
        %503 = vmatpush2.msra.mxu0 0.0
        %504 = vmatprep.subr.mxu0 0.0
        %505 = vmatpush2.msra.mxu0 0.0
        %506 = vmatprep.subr.mxu0 0.0
        %507 = vmatpush2.msra.mxu0 0.0
        %508 = vmatprep.subr.mxu0 0.0
        %509 = vmatpush2.msra.mxu0 0.0
        %510 = vmatprep.subr.mxu0 0.0
        %511 = vmatpush2.msra.mxu0 0.0
        %512 = vmatprep.subr.mxu0 0.0
        %513 = vmatpush2.msra.mxu0 0.0
        %514 = vmatprep.subr.mxu0 0.0
        %515 = vmatpush2.msra.mxu0 0.0
        %516 = vmatprep.subr.mxu0 0.0
        %517 = vmatpush2.msra.mxu0 0.0
        %518 = vmatprep.subr.mxu0 0.0
        %519 = vmatpush2.msra.mxu0 0.0
        %520 = vmatprep.subr.mxu0 0.0
        %521 = vmatpush2.msra.mxu0 0.0
        %522 = vmatprep.subr.mxu0 0.0
        %523 = vmatpush2.msra.mxu0 0.0
        %524 = vmatprep.subr.mxu0 0.0
        %525 = vmatpush2.msra.mxu0 0.0
        %526 = vmatprep.mubr.f32.mxu0 0.0
        %527 = vmatmul.mubr.f32.gmra.mxu0 %v457
        %v528 = vpop.f32.mrf.mxu0
        %v529 = vadd.f32 0.0, %v528
        %v530 = vpop.f32.mrf.mxu0
        %531 = vmatprep.mubr.f32.mxu0 0.0
        %532 = vmatmul.mubr.f32.gmra.mxu0 %v460
        %v533 = vpop.f32.mrf.mxu0
        %v534 = vadd.f32 0.0, %v533
        %v535 = vpop.f32.mrf.mxu0
        %536 = vdwg.mxu0
        %v537 = vmul.f32 %v529, 0.0625
        %v538 = vmul.f32 %v534, 0.0625
        %540 = vset.pattern.permute.xlu0 0
        %541 = vperm.xlu0 %540, %v537
        %v542 = vpop.permute.xlu0 %541
        %545 = vset.pattern.permute.xlu0 0
        %546 = vperm.xlu0 %545, %v538
        %v547 = vpop.permute.xlu0 %546
        %v549 = vsub.f32 %v441, %v542
        %v550 = vsub.f32 %v446, %v547
        %v551 = vmul.f32 %v549, %v348
        %v552 = vmul.f32 %v550, %v348
        %v553 = vmul.f32 %v551, %v551
        %v554 = vmul.f32 %v552, %v552
        %555 = vadd.xlane.f32.xlu0 %v553
        %v556 = vpop.xlane.xlu0 %555
        %557 = vadd.xlane.f32.xlu0 %v554
        %v558 = vpop.xlane.xlu0 %557
        %559 = vmatprep.subr.mxu0 0.0
        %560 = vmatpush1.msra.mxu0 0.0
        %561 = vmatprep.subr.mxu0 0.0
        %562 = vmatpush1.msra.mxu0 0.0
        %563 = vmatprep.subr.mxu0 0.0
        %564 = vmatpush1.msra.mxu0 0.0
        %565 = vmatprep.subr.mxu0 0.0
        %566 = vmatpush1.msra.mxu0 0.0
        %567 = vmatprep.subr.mxu0 0.0
        %568 = vmatpush1.msra.mxu0 0.0
        %569 = vmatprep.subr.mxu0 0.0
        %570 = vmatpush1.msra.mxu0 0.0
        %571 = vmatprep.subr.mxu0 0.0
        %572 = vmatpush1.msra.mxu0 0.0
        %573 = vmatprep.subr.mxu0 0.0
        %574 = vmatpush1.msra.mxu0 0.0
        %575 = vmatprep.subr.mxu0 0.0
        %576 = vmatpush1.msra.mxu0 0.0
        %577 = vmatprep.subr.mxu0 0.0
        %578 = vmatpush1.msra.mxu0 0.0
        %579 = vmatprep.subr.mxu0 0.0
        %580 = vmatpush1.msra.mxu0 0.0
        %581 = vmatprep.subr.mxu0 0.0
        %582 = vmatpush1.msra.mxu0 0.0
        %583 = vmatprep.subr.mxu0 0.0
        %584 = vmatpush1.msra.mxu0 0.0
        %585 = vmatprep.subr.mxu0 0.0
        %586 = vmatpush1.msra.mxu0 0.0
        %587 = vmatprep.subr.mxu0 0.0
        %588 = vmatpush1.msra.mxu0 %v558
        %589 = vmatprep.subr.mxu0 0.0
        %590 = vmatpush1.msra.mxu0 %v556
        %591 = vmatprep.subr.mxu0 0.0
        %592 = vmatpush2.msra.mxu0 0.0
        %593 = vmatprep.subr.mxu0 0.0
        %594 = vmatpush2.msra.mxu0 0.0
        %595 = vmatprep.subr.mxu0 0.0
        %596 = vmatpush2.msra.mxu0 0.0
        %597 = vmatprep.subr.mxu0 0.0
        %598 = vmatpush2.msra.mxu0 0.0
        %599 = vmatprep.subr.mxu0 0.0
        %600 = vmatpush2.msra.mxu0 0.0
        %601 = vmatprep.subr.mxu0 0.0
        %602 = vmatpush2.msra.mxu0 0.0
        %603 = vmatprep.subr.mxu0 0.0
        %604 = vmatpush2.msra.mxu0 0.0
        %605 = vmatprep.subr.mxu0 0.0
        %606 = vmatpush2.msra.mxu0 0.0
        %607 = vmatprep.subr.mxu0 0.0
        %608 = vmatpush2.msra.mxu0 0.0
        %609 = vmatprep.subr.mxu0 0.0
        %610 = vmatpush2.msra.mxu0 0.0
        %611 = vmatprep.subr.mxu0 0.0
        %612 = vmatpush2.msra.mxu0 0.0
        %613 = vmatprep.subr.mxu0 0.0
        %614 = vmatpush2.msra.mxu0 0.0
        %615 = vmatprep.subr.mxu0 0.0
        %616 = vmatpush2.msra.mxu0 0.0
        %617 = vmatprep.subr.mxu0 0.0
        %618 = vmatpush2.msra.mxu0 0.0
        %619 = vmatprep.subr.mxu0 0.0
        %620 = vmatpush2.msra.mxu0 0.0
        %621 = vmatprep.subr.mxu0 0.0
        %622 = vmatpush2.msra.mxu0 0.0
        %623 = vmatprep.mubr.f32.mxu0 0.0
        %624 = vmatmul.mubr.f32.gmra.mxu0 %v457
        %v625 = vpop.f32.mrf.mxu0
        %v626 = vadd.f32 0.0, %v625
        %v627 = vpop.f32.mrf.mxu0
        %628 = vmatprep.mubr.f32.mxu0 0.0
        %629 = vmatmul.mubr.f32.gmra.mxu0 %v460
        %v630 = vpop.f32.mrf.mxu0
        %v631 = vadd.f32 0.0, %v630
        %v632 = vpop.f32.mrf.mxu0
        %633 = vdwg.mxu0
        %v634 = vmul.f32 %v626, 0.0625
        %v635 = vmul.f32 %v631, 0.0625
        %v636 = vadd.f32 %v634, 1e-05
        %v637 = vadd.f32 %v635, 1e-05
        %v638 = vrsqrt.pop %v636
        %v639 = vrsqrt.pop %v637
        %641 = vset.pattern.permute.xlu0 0
        %642 = vperm.xlu0 %641, %v638
        %v643 = vpop.permute.xlu0 %642
        %646 = vset.pattern.permute.xlu0 0
        %647 = vperm.xlu0 %646, %v639
        %v648 = vpop.permute.xlu0 %647
        %v650 = vmul.f32 %v549, %v643
        %v651 = vmul.f32 %v550, %v648
        %652 = vset.pattern.permute.xlu0 1
        %653 = vperm.xlu0 %652, %v349
        %v654 = vpop.permute.xlu0 %653
        %656 = vset.pattern.permute.xlu0 1
        %657 = vperm.xlu0 %656, %v350
        %v658 = vpop.permute.xlu0 %657
        %v660 = vmul.f32 %v650, %v654
        %v661 = vmul.f32 %v651, %v658
        %662 = vset.pattern.permute.xlu0 2
        %663 = vperm.xlu0 %662, %v349
        %v664 = vpop.permute.xlu0 %663
        %666 = vset.pattern.permute.xlu0 2
        %667 = vperm.xlu0 %666, %v350
        %v668 = vpop.permute.xlu0 %667
        %v670 = vadd.f32 %v660, %v664
        %v671 = vadd.f32 %v661, %v668
        %v672 = vmul.f32 %v670, 1.442695
        %v673 = vpow.pop %v672
        %v674 = vmul.f32 %v671, 1.442695
        %v675 = vpow.pop %v674
        %v676 = vadd.f32 %v673, 1.0
        %v677 = vadd.f32 %v675, 1.0
        %v678 = vmul.f32 %v676, %v676
        %v679 = vmul.f32 %v677, %v677
        %v680 = vsub.f32 %v678, 1.0
        %v681 = vsub.f32 %v679, 1.0
        %v682 = vmul.f32 %v670, %v680
        %v683 = vmul.f32 %v671, %v681
        %v684 = vadd.f32 %v678, 1.0
        %v685 = vadd.f32 %v679, 1.0
        %v686 = vrcp.pop %v684
        %v687 = vrcp.pop %v685
        %v688 = vmul.f32 %v682, %v686
        %v689 = vmul.f32 %v683, %v687
        %vm690 = vcmp.gt.f32.partialorder %v670, 20.0
        %vm691 = vcmp.gt.f32.partialorder %v671, 20.0
        %v692 = vsel %vm690, %v670, %v688
        %v693 = vsel %vm691, %v671, %v689
        %v694 = vld [vmem:[%s335] sm:$0xff]
        %v695 = vld [vmem:[%s335 + $0x8] sm:$0xff]
        %697 = vset.pattern.permute.xlu0 0
        %698 = vperm.xlu0 %697, %v694
        %v699 = vpop.permute.xlu0 %698
        %702 = vset.pattern.permute.xlu0 0
        %703 = vperm.xlu0 %702, %v695
        %v704 = vpop.permute.xlu0 %703
        %v706 = vmul.f32 %v699, %v692
        %v707 = vmul.f32 %v704, %v693
        %v708 = vld [vmem:[%s340] sm:$0xff]
        %v709 = vld [vmem:[%s340 + $0x8] sm:$0xff]
        %711 = vset.pattern.permute.xlu0 0
        %712 = vperm.xlu0 %711, %v708
        %v713 = vpop.permute.xlu0 %712
        %716 = vset.pattern.permute.xlu0 0
        %717 = vperm.xlu0 %716, %v709
        %v718 = vpop.permute.xlu0 %717
        %v720 = vadd.f32 %v706, %v713
        %v721 = vadd.f32 %v707, %v718
        %v722 = vmul.f32 %v720, %v348
        %v723 = vmul.f32 %v721, %v348
        %724 = vrot.lane.b32.xlu0 %v722, 1
        %v725 = vpop.permute.xlu0 %724
        %726 = vrot.lane.b32.xlu0 %v723, 1
        %v727 = vpop.permute.xlu0 %726
        %728 = vrot.lane.b32.xlu0 %v722, 127
        %v729 = vpop.permute.xlu0 %728
        %730 = vrot.lane.b32.xlu0 %v723, 127
        %v731 = vpop.permute.xlu0 %730
        %v732 = vld [vmem:[%s4] sm:$0xff]
        %v733 = vld [vmem:[%s4 + $0x8] sm:$0xff]
        %734 = vset.pattern.permute.xlu0 3
        %735 = vperm.xlu0 %734, %v349
        %v736 = vpop.permute.xlu0 %735
        %738 = vset.pattern.permute.xlu0 3
        %739 = vperm.xlu0 %738, %v350
        %v740 = vpop.permute.xlu0 %739
        %vm742 = vcmask 392192
        %v744 = vsel %vm742, %v732, 0
        %v747 = vsel %vm742, %v733, 0
        %749 = vmatprep.subr.mxu0 0.0
        %750 = vmatpush1.msra.mxu0 0.0
        %751 = vmatprep.subr.mxu0 0.0
        %752 = vmatpush1.msra.mxu0 0.0
        %753 = vmatprep.subr.mxu0 0.0
        %754 = vmatpush1.msra.mxu0 0.0
        %755 = vmatprep.subr.mxu0 0.0
        %756 = vmatpush1.msra.mxu0 0.0
        %757 = vmatprep.subr.mxu0 0.0
        %758 = vmatpush1.msra.mxu0 0.0
        %759 = vmatprep.subr.mxu0 0.0
        %760 = vmatpush1.msra.mxu0 0.0
        %761 = vmatprep.subr.mxu0 0.0
        %762 = vmatpush1.msra.mxu0 0.0
        %763 = vmatprep.subr.mxu0 0.0
        %764 = vmatpush1.msra.mxu0 0.0
        %765 = vmatprep.subr.mxu0 0.0
        %766 = vmatpush1.msra.mxu0 0.0
        %767 = vmatprep.subr.mxu0 0.0
        %768 = vmatpush1.msra.mxu0 0.0
        %769 = vmatprep.subr.mxu0 0.0
        %770 = vmatpush1.msra.mxu0 %v731
        %771 = vmatprep.subr.mxu0 0.0
        %772 = vmatpush1.msra.mxu0 %v729
        %773 = vmatprep.subr.mxu0 0.0
        %774 = vmatpush1.msra.mxu0 %v723
        %775 = vmatprep.subr.mxu0 0.0
        %776 = vmatpush1.msra.mxu0 %v722
        %777 = vmatprep.subr.mxu0 0.0
        %778 = vmatpush1.msra.mxu0 %v727
        %779 = vmatprep.subr.mxu0 0.0
        %780 = vmatpush1.msra.mxu0 %v725
        %781 = vmatprep.subr.mxu0 0.0
        %782 = vmatpush2.msra.mxu0 0.0
        %783 = vmatprep.subr.mxu0 0.0
        %784 = vmatpush2.msra.mxu0 0.0
        %785 = vmatprep.subr.mxu0 0.0
        %786 = vmatpush2.msra.mxu0 0.0
        %787 = vmatprep.subr.mxu0 0.0
        %788 = vmatpush2.msra.mxu0 0.0
        %789 = vmatprep.subr.mxu0 0.0
        %790 = vmatpush2.msra.mxu0 0.0
        %791 = vmatprep.subr.mxu0 0.0
        %792 = vmatpush2.msra.mxu0 0.0
        %793 = vmatprep.subr.mxu0 0.0
        %794 = vmatpush2.msra.mxu0 0.0
        %795 = vmatprep.subr.mxu0 0.0
        %796 = vmatpush2.msra.mxu0 0.0
        %797 = vmatprep.subr.mxu0 0.0
        %798 = vmatpush2.msra.mxu0 0.0
        %799 = vmatprep.subr.mxu0 0.0
        %800 = vmatpush2.msra.mxu0 0.0
        %801 = vmatprep.subr.mxu0 0.0
        %802 = vmatpush2.msra.mxu0 0.0
        %803 = vmatprep.subr.mxu0 0.0
        %804 = vmatpush2.msra.mxu0 0.0
        %805 = vmatprep.subr.mxu0 0.0
        %806 = vmatpush2.msra.mxu0 0.0
        %807 = vmatprep.subr.mxu0 0.0
        %808 = vmatpush2.msra.mxu0 0.0
        %809 = vmatprep.subr.mxu0 0.0
        %810 = vmatpush2.msra.mxu0 0.0
        %811 = vmatprep.subr.mxu0 0.0
        %812 = vmatpush2.msra.mxu0 0.0
        %813 = vmatprep.mubr.f32.mxu0 0.0
        %814 = vmatmul.mubr.f32.gmra.mxu0 %v744
        %v815 = vpop.f32.mrf.mxu0
        %v816 = vadd.f32 %v736, %v815
        %v817 = vpop.f32.mrf.mxu0
        %818 = vmatprep.mubr.f32.mxu0 0.0
        %819 = vmatmul.mubr.f32.gmra.mxu0 %v747
        %v820 = vpop.f32.mrf.mxu0
        %v821 = vadd.f32 %v740, %v820
        %v822 = vpop.f32.mrf.mxu0
        %823 = vdwg.mxu0
        %v824 = vmul.f32 %v816, %v348
        %v825 = vmul.f32 %v821, %v348
        %826 = vadd.xlane.f32.xlu0 %v824
        %v827 = vpop.xlane.xlu0 %826
        %828 = vadd.xlane.f32.xlu0 %v825
        %v829 = vpop.xlane.xlu0 %828
        %830 = vmatprep.subr.mxu0 0.0
        %831 = vmatpush1.msra.mxu0 0.0
        %832 = vmatprep.subr.mxu0 0.0
        %833 = vmatpush1.msra.mxu0 0.0
        %834 = vmatprep.subr.mxu0 0.0
        %835 = vmatpush1.msra.mxu0 0.0
        %836 = vmatprep.subr.mxu0 0.0
        %837 = vmatpush1.msra.mxu0 0.0
        %838 = vmatprep.subr.mxu0 0.0
        %839 = vmatpush1.msra.mxu0 0.0
        %840 = vmatprep.subr.mxu0 0.0
        %841 = vmatpush1.msra.mxu0 0.0
        %842 = vmatprep.subr.mxu0 0.0
        %843 = vmatpush1.msra.mxu0 0.0
        %844 = vmatprep.subr.mxu0 0.0
        %845 = vmatpush1.msra.mxu0 0.0
        %846 = vmatprep.subr.mxu0 0.0
        %847 = vmatpush1.msra.mxu0 0.0
        %848 = vmatprep.subr.mxu0 0.0
        %849 = vmatpush1.msra.mxu0 0.0
        %850 = vmatprep.subr.mxu0 0.0
        %851 = vmatpush1.msra.mxu0 0.0
        %852 = vmatprep.subr.mxu0 0.0
        %853 = vmatpush1.msra.mxu0 0.0
        %854 = vmatprep.subr.mxu0 0.0
        %855 = vmatpush1.msra.mxu0 0.0
        %856 = vmatprep.subr.mxu0 0.0
        %857 = vmatpush1.msra.mxu0 0.0
        %858 = vmatprep.subr.mxu0 0.0
        %859 = vmatpush1.msra.mxu0 %v829
        %860 = vmatprep.subr.mxu0 0.0
        %861 = vmatpush1.msra.mxu0 %v827
        %862 = vmatprep.subr.mxu0 0.0
        %863 = vmatpush2.msra.mxu0 0.0
        %864 = vmatprep.subr.mxu0 0.0
        %865 = vmatpush2.msra.mxu0 0.0
        %866 = vmatprep.subr.mxu0 0.0
        %867 = vmatpush2.msra.mxu0 0.0
        %868 = vmatprep.subr.mxu0 0.0
        %869 = vmatpush2.msra.mxu0 0.0
        %870 = vmatprep.subr.mxu0 0.0
        %871 = vmatpush2.msra.mxu0 0.0
        %872 = vmatprep.subr.mxu0 0.0
        %873 = vmatpush2.msra.mxu0 0.0
        %874 = vmatprep.subr.mxu0 0.0
        %875 = vmatpush2.msra.mxu0 0.0
        %876 = vmatprep.subr.mxu0 0.0
        %877 = vmatpush2.msra.mxu0 0.0
        %878 = vmatprep.subr.mxu0 0.0
        %879 = vmatpush2.msra.mxu0 0.0
        %880 = vmatprep.subr.mxu0 0.0
        %881 = vmatpush2.msra.mxu0 0.0
        %882 = vmatprep.subr.mxu0 0.0
        %883 = vmatpush2.msra.mxu0 0.0
        %884 = vmatprep.subr.mxu0 0.0
        %885 = vmatpush2.msra.mxu0 0.0
        %886 = vmatprep.subr.mxu0 0.0
        %887 = vmatpush2.msra.mxu0 0.0
        %888 = vmatprep.subr.mxu0 0.0
        %889 = vmatpush2.msra.mxu0 0.0
        %890 = vmatprep.subr.mxu0 0.0
        %891 = vmatpush2.msra.mxu0 0.0
        %892 = vmatprep.subr.mxu0 0.0
        %893 = vmatpush2.msra.mxu0 0.0
        %894 = vmatprep.mubr.f32.mxu0 0.0
        %895 = vmatmul.mubr.f32.gmra.mxu0 %v457
        %v896 = vpop.f32.mrf.mxu0
        %v897 = vadd.f32 0.0, %v896
        %v898 = vpop.f32.mrf.mxu0
        %899 = vmatprep.mubr.f32.mxu0 0.0
        %900 = vmatmul.mubr.f32.gmra.mxu0 %v460
        %v901 = vpop.f32.mrf.mxu0
        %v902 = vadd.f32 0.0, %v901
        %v903 = vpop.f32.mrf.mxu0
        %904 = vdwg.mxu0
        %v905 = vmul.f32 %v897, 0.0625
        %v906 = vmul.f32 %v902, 0.0625
        %908 = vset.pattern.permute.xlu0 0
        %909 = vperm.xlu0 %908, %v905
        %v910 = vpop.permute.xlu0 %909
        %913 = vset.pattern.permute.xlu0 0
        %914 = vperm.xlu0 %913, %v906
        %v915 = vpop.permute.xlu0 %914
        %v917 = vsub.f32 %v816, %v910
        %v918 = vsub.f32 %v821, %v915
        %v919 = vmul.f32 %v917, %v348
        %v920 = vmul.f32 %v918, %v348
        %v921 = vmul.f32 %v919, %v919
        %v922 = vmul.f32 %v920, %v920
        %923 = vadd.xlane.f32.xlu0 %v921
        %v924 = vpop.xlane.xlu0 %923
        %925 = vadd.xlane.f32.xlu0 %v922
        %v926 = vpop.xlane.xlu0 %925
        %927 = vmatprep.subr.mxu0 0.0
        %928 = vmatpush1.msra.mxu0 0.0
        %929 = vmatprep.subr.mxu0 0.0
        %930 = vmatpush1.msra.mxu0 0.0
        %931 = vmatprep.subr.mxu0 0.0
        %932 = vmatpush1.msra.mxu0 0.0
        %933 = vmatprep.subr.mxu0 0.0
        %934 = vmatpush1.msra.mxu0 0.0
        %935 = vmatprep.subr.mxu0 0.0
        %936 = vmatpush1.msra.mxu0 0.0
        %937 = vmatprep.subr.mxu0 0.0
        %938 = vmatpush1.msra.mxu0 0.0
        %939 = vmatprep.subr.mxu0 0.0
        %940 = vmatpush1.msra.mxu0 0.0
        %941 = vmatprep.subr.mxu0 0.0
        %942 = vmatpush1.msra.mxu0 0.0
        %943 = vmatprep.subr.mxu0 0.0
        %944 = vmatpush1.msra.mxu0 0.0
        %945 = vmatprep.subr.mxu0 0.0
        %946 = vmatpush1.msra.mxu0 0.0
        %947 = vmatprep.subr.mxu0 0.0
        %948 = vmatpush1.msra.mxu0 0.0
        %949 = vmatprep.subr.mxu0 0.0
        %950 = vmatpush1.msra.mxu0 0.0
        %951 = vmatprep.subr.mxu0 0.0
        %952 = vmatpush1.msra.mxu0 0.0
        %953 = vmatprep.subr.mxu0 0.0
        %954 = vmatpush1.msra.mxu0 0.0
        %955 = vmatprep.subr.mxu0 0.0
        %956 = vmatpush1.msra.mxu0 %v926
        %957 = vmatprep.subr.mxu0 0.0
        %958 = vmatpush1.msra.mxu0 %v924
        %959 = vmatprep.subr.mxu0 0.0
        %960 = vmatpush2.msra.mxu0 0.0
        %961 = vmatprep.subr.mxu0 0.0
        %962 = vmatpush2.msra.mxu0 0.0
        %963 = vmatprep.subr.mxu0 0.0
        %964 = vmatpush2.msra.mxu0 0.0
        %965 = vmatprep.subr.mxu0 0.0
        %966 = vmatpush2.msra.mxu0 0.0
        %967 = vmatprep.subr.mxu0 0.0
        %968 = vmatpush2.msra.mxu0 0.0
        %969 = vmatprep.subr.mxu0 0.0
        %970 = vmatpush2.msra.mxu0 0.0
        %971 = vmatprep.subr.mxu0 0.0
        %972 = vmatpush2.msra.mxu0 0.0
        %973 = vmatprep.subr.mxu0 0.0
        %974 = vmatpush2.msra.mxu0 0.0
        %975 = vmatprep.subr.mxu0 0.0
        %976 = vmatpush2.msra.mxu0 0.0
        %977 = vmatprep.subr.mxu0 0.0
        %978 = vmatpush2.msra.mxu0 0.0
        %979 = vmatprep.subr.mxu0 0.0
        %980 = vmatpush2.msra.mxu0 0.0
        %981 = vmatprep.subr.mxu0 0.0
        %982 = vmatpush2.msra.mxu0 0.0
        %983 = vmatprep.subr.mxu0 0.0
        %984 = vmatpush2.msra.mxu0 0.0
        %985 = vmatprep.subr.mxu0 0.0
        %986 = vmatpush2.msra.mxu0 0.0
        %987 = vmatprep.subr.mxu0 0.0
        %988 = vmatpush2.msra.mxu0 0.0
        %989 = vmatprep.subr.mxu0 0.0
        %990 = vmatpush2.msra.mxu0 0.0
        %991 = vmatprep.mubr.f32.mxu0 0.0
        %992 = vmatmul.mubr.f32.gmra.mxu0 %v457
        %v993 = vpop.f32.mrf.mxu0
        %v994 = vadd.f32 0.0, %v993
        %v995 = vpop.f32.mrf.mxu0
        %996 = vmatprep.mubr.f32.mxu0 0.0
        %997 = vmatmul.mubr.f32.gmra.mxu0 %v460
        %v998 = vpop.f32.mrf.mxu0
        %v999 = vadd.f32 0.0, %v998
        %v1000 = vpop.f32.mrf.mxu0
        %1001 = vdwg.mxu0
        %v1002 = vmul.f32 %v994, 0.0625
        %v1003 = vmul.f32 %v999, 0.0625
        %v1004 = vadd.f32 %v1002, 1e-05
        %v1005 = vadd.f32 %v1003, 1e-05
        %v1006 = vrsqrt.pop %v1004
        %v1007 = vrsqrt.pop %v1005
        %1009 = vset.pattern.permute.xlu0 0
        %1010 = vperm.xlu0 %1009, %v1006
        %v1011 = vpop.permute.xlu0 %1010
        %1014 = vset.pattern.permute.xlu0 0
        %1015 = vperm.xlu0 %1014, %v1007
        %v1016 = vpop.permute.xlu0 %1015
        %v1018 = vmul.f32 %v917, %v1011
        %v1019 = vmul.f32 %v918, %v1016
        %1020 = vset.pattern.permute.xlu0 4
        %1021 = vperm.xlu0 %1020, %v349
        %v1022 = vpop.permute.xlu0 %1021
        %1024 = vset.pattern.permute.xlu0 4
        %1025 = vperm.xlu0 %1024, %v350
        %v1026 = vpop.permute.xlu0 %1025
        %v1028 = vmul.f32 %v1018, %v1022
        %v1029 = vmul.f32 %v1019, %v1026
        %1030 = vset.pattern.permute.xlu0 5
        %1031 = vperm.xlu0 %1030, %v349
        %v1032 = vpop.permute.xlu0 %1031
        %1034 = vset.pattern.permute.xlu0 5
        %1035 = vperm.xlu0 %1034, %v350
        %v1036 = vpop.permute.xlu0 %1035
        %v1038 = vadd.f32 %v1028, %v1032
        %v1039 = vadd.f32 %v1029, %v1036
        %v1040 = vmul.f32 %v1038, 1.442695
        %v1041 = vpow.pop %v1040
        %v1042 = vmul.f32 %v1039, 1.442695
        %v1043 = vpow.pop %v1042
        %v1044 = vadd.f32 %v1041, 1.0
        %v1045 = vadd.f32 %v1043, 1.0
        %v1046 = vmul.f32 %v1044, %v1044
        %v1047 = vmul.f32 %v1045, %v1045
        %v1048 = vsub.f32 %v1046, 1.0
        %v1049 = vsub.f32 %v1047, 1.0
        %v1050 = vmul.f32 %v1038, %v1048
        %v1051 = vmul.f32 %v1039, %v1049
        %v1052 = vadd.f32 %v1046, 1.0
        %v1053 = vadd.f32 %v1047, 1.0
        %v1054 = vrcp.pop %v1052
        %v1055 = vrcp.pop %v1053
        %v1056 = vmul.f32 %v1050, %v1054
        %v1057 = vmul.f32 %v1051, %v1055
        %vm1058 = vcmp.gt.f32.partialorder %v1038, 20.0
        %vm1059 = vcmp.gt.f32.partialorder %v1039, 20.0
        %v1060 = vsel %vm1058, %v1038, %v1056
        %v1061 = vsel %vm1059, %v1039, %v1057
        %v1062 = vld [vmem:[%s7] sm:$0xff]
        %v1063 = vld [vmem:[%s7 + $0x8] sm:$0xff]
        %1064 = vset.pattern.permute.xlu0 6
        %1065 = vperm.xlu0 %1064, %v349
        %v1066 = vpop.permute.xlu0 %1065
        %1068 = vset.pattern.permute.xlu0 6
        %1069 = vperm.xlu0 %1068, %v350
        %v1070 = vpop.permute.xlu0 %1069
        %vm1072 = vcmask 64512
        %v1074 = vsel %vm1072, %v1062, 0
        %v1077 = vsel %vm1072, %v1063, 0
        %1079 = vmatprep.subr.mxu0 0.0
        %1080 = vmatpush1.msra.mxu0 0.0
        %1081 = vmatprep.subr.mxu0 0.0
        %1082 = vmatpush1.msra.mxu0 0.0
        %1083 = vmatprep.subr.mxu0 0.0
        %1084 = vmatpush1.msra.mxu0 0.0
        %1085 = vmatprep.subr.mxu0 0.0
        %1086 = vmatpush1.msra.mxu0 0.0
        %1087 = vmatprep.subr.mxu0 0.0
        %1088 = vmatpush1.msra.mxu0 0.0
        %1089 = vmatprep.subr.mxu0 0.0
        %1090 = vmatpush1.msra.mxu0 0.0
        %1091 = vmatprep.subr.mxu0 0.0
        %1092 = vmatpush1.msra.mxu0 0.0
        %1093 = vmatprep.subr.mxu0 0.0
        %1094 = vmatpush1.msra.mxu0 0.0
        %1095 = vmatprep.subr.mxu0 0.0
        %1096 = vmatpush1.msra.mxu0 0.0
        %1097 = vmatprep.subr.mxu0 0.0
        %1098 = vmatpush1.msra.mxu0 0.0
        %1099 = vmatprep.subr.mxu0 0.0
        %1100 = vmatpush1.msra.mxu0 0.0
        %1101 = vmatprep.subr.mxu0 0.0
        %1102 = vmatpush1.msra.mxu0 0.0
        %1103 = vmatprep.subr.mxu0 0.0
        %1104 = vmatpush1.msra.mxu0 0.0
        %1105 = vmatprep.subr.mxu0 0.0
        %1106 = vmatpush1.msra.mxu0 0.0
        %1107 = vmatprep.subr.mxu0 0.0
        %1108 = vmatpush1.msra.mxu0 0.0
        %1109 = vmatprep.subr.mxu0 0.0
        %1110 = vmatpush1.msra.mxu0 %v341
        %1111 = vmatprep.subr.mxu0 0.0
        %1112 = vmatpush2.msra.mxu0 0.0
        %1113 = vmatprep.subr.mxu0 0.0
        %1114 = vmatpush2.msra.mxu0 0.0
        %1115 = vmatprep.subr.mxu0 0.0
        %1116 = vmatpush2.msra.mxu0 0.0
        %1117 = vmatprep.subr.mxu0 0.0
        %1118 = vmatpush2.msra.mxu0 0.0
        %1119 = vmatprep.subr.mxu0 0.0
        %1120 = vmatpush2.msra.mxu0 0.0
        %1121 = vmatprep.subr.mxu0 0.0
        %1122 = vmatpush2.msra.mxu0 0.0
        %1123 = vmatprep.subr.mxu0 0.0
        %1124 = vmatpush2.msra.mxu0 0.0
        %1125 = vmatprep.subr.mxu0 0.0
        %1126 = vmatpush2.msra.mxu0 0.0
        %1127 = vmatprep.subr.mxu0 0.0
        %1128 = vmatpush2.msra.mxu0 0.0
        %1129 = vmatprep.subr.mxu0 0.0
        %1130 = vmatpush2.msra.mxu0 0.0
        %1131 = vmatprep.subr.mxu0 0.0
        %1132 = vmatpush2.msra.mxu0 0.0
        %1133 = vmatprep.subr.mxu0 0.0
        %1134 = vmatpush2.msra.mxu0 0.0
        %1135 = vmatprep.subr.mxu0 0.0
        %1136 = vmatpush2.msra.mxu0 0.0
        %1137 = vmatprep.subr.mxu0 0.0
        %1138 = vmatpush2.msra.mxu0 0.0
        %1139 = vmatprep.subr.mxu0 0.0
        %1140 = vmatpush2.msra.mxu0 0.0
        %1141 = vmatprep.subr.mxu0 0.0
        %1142 = vmatpush2.msra.mxu0 0.0
        %1143 = vmatprep.mubr.f32.mxu0 0.0
        %1144 = vmatmul.mubr.f32.gmra.mxu0 %v1074
        %v1145 = vpop.f32.mrf.mxu0
        %v1146 = vadd.f32 %v1066, %v1145
        %v1147 = vpop.f32.mrf.mxu0
        %1148 = vmatprep.mubr.f32.mxu0 0.0
        %1149 = vmatmul.mubr.f32.gmra.mxu0 %v1077
        %v1150 = vpop.f32.mrf.mxu0
        %v1151 = vadd.f32 %v1070, %v1150
        %v1152 = vpop.f32.mrf.mxu0
        %1153 = vdwg.mxu0
        %v1154 = vadd.f32 %v1060, %v1146
        %v1155 = vadd.f32 %v1061, %v1151
        %1156 = vst [vmem:[%s326] sm:$0xff] %v1154
        %1157 = vst [vmem:[%s326 + $0x8] sm:$0xff] %v1155
        %s1158 = sand.u32 %s213, 1
        %s1159 = scalar_lea.sflag [#allocation3], %s1158
        %s1160 = sand.u32 %s213, 1
        %s1161 = smul.addr %s1160, 16
        %s1162 = scalar_lea.vmem [#allocation2], %s1161
        // Predicated region
        $region53: #{tpu_custom_call.1} parent=51 // pred_check
          %p1163 = pneg %p223
        $region54: #{tpu_custom_call.1} parent=51 // pred_check_branch
          %1165 = sbr.rel (%p1163) target = $region56
        $region55: #{tpu_custom_call.1} parent=51 // pred_region
          %s1167 = ssub.s32 256, 256
          %1168 = vsyncadd %s1159, %s1167
          %s1169 = smul.addr %s22, 2
          %s1170 = smul.addr %s1169, 128
          %s1171 = scalar_lea.hbm %s8, %s1170
          %s1172 = sshll.u32 %s1162, 4
          %s1173 = int_to_ptr.vmem [resolvable:$true] %s1172
          %1178 = dma.vmem_to_hbm [thread:$0]  %s1173, 256, %s1171, %s1159, 128, 128, 8
        $region56: #{tpu_custom_call.1} parent=51 // pred_fallthru
          _
      $region52: #{tpu_custom_call.1} parent=5 // pred_fallthru
        _
      %p1179 = scmp.le.s32.totalorder 2, %s17
      // Predicated region
      $region57: #{tpu_custom_call.1} parent=5 // pred_check
        %p1180 = pneg %p1179
      $region58: #{tpu_custom_call.1} parent=5 // pred_check_branch
        %1182 = sbr.rel (%p1180) target = $region60
      $region59: #{tpu_custom_call.1} parent=5 // pred_region
        %s1183 = ssub.s32 %s17, 2
        // Predicated region
        $region61: #{tpu_custom_call.1} parent=59 // pred_check
          %p1184 = pneg %p229
        $region62: #{tpu_custom_call.1} parent=59 // pred_check_branch
          %1186 = sbr.rel (%p1184) target = $region64
        $region63: #{tpu_custom_call.1} parent=59 // pred_region
          %s1187 = sand.u32 %s214, 1
          %s1188 = scalar_lea.sflag [#allocation3], %s1187
          %s1189 = sand.u32 %s214, 1
          %s1190 = smul.addr %s1189, 16
          %s1191 = scalar_lea.vmem [#allocation2], %s1190
          %1192 = dma.done %s1188, 256
        $region64: #{tpu_custom_call.1} parent=59 // pred_fallthru
          _
      $region60: #{tpu_custom_call.1} parent=5 // pred_fallthru
        _
    $region6: #{tpu_custom_call.1} parent=1 // loop_footer
      %s21 = sadd.s32 1, %s17
    $region7: #{tpu_custom_call.1} parent=1 // loop_footer_branch
      %16 = sbr.rel target = $region3
    $region8: #{tpu_custom_call.1} parent=1 // loop_exit
      _
    %1193 = vsyncpa [#allocation3], 1
    %s1194 = scalar_lea.sflag [#allocation3], 1
    %1195 = vsyncpa %s1194, 1

</llo_original>
